<compile_context>
chip_gen: v7x
topology: tpu7x:2x2x1
jax: 0.10.0
libtpu: 0.0.40
codegen_flags: <defaults>
</compile_context>

<pallas_src>
import functools

import jax
import jax.numpy as jnp
from jax import lax
from jax.experimental import pallas as pl
from jax.experimental.pallas import tpu as pltpu


def _round_up(x, m):
    return (x + m - 1) // m * m


# ----------------------------- Pallas kernels -------------------------------

def _cconvt_stats_kernel(x_ref, w_ref, out_ref, stat_ref, acc_ref,
                         *, NHq, max_dh, WC):
    """One sub-pixel plane of the complex ConvTranspose2d, all batch elements.

    x_ref   : (N*Hq, W*2Cin)  bf16   LHS; per-batch rows [H, Hq) are zero
    w_ref   : (1, W*2Cin, max_dh*WC) bf16  block-Toeplitz weights (this plane)
    out_ref : (1, N*Hq, WC)   bf16   conv output, WC = Wq*C2 lanes
    stat_ref: (1, 2, WC)      f32    per-(qw, channel) [sum, sumsq] partials
    acc_ref : (N*Hq, WC)      f32 VMEM scratch
    Conv bias is intentionally NOT added: it cancels under training-mode BN.
    """
    x = x_ref[...]
    # dh == 0 chunk writes the accumulator outright (no zero-init pass).
    acc_ref[...] = jnp.dot(x, w_ref[0, :, 0:WC],
                           preferred_element_type=jnp.float32)
    for dh in range(1, max_dh):                    # static, small (e.g. 4)
        y = jnp.dot(x, w_ref[0, :, dh * WC:(dh + 1) * WC],
                    preferred_element_type=jnp.float32)
        # Global row shift by dh: zero rows [H, Hq) of every batch block in
        # the LHS guarantee no spill across batch boundaries.
        acc_ref[dh:NHq, :] += y[0:NHq - dh, :]
    a = acc_ref[...]
    out_ref[0, :, :] = a.astype(out_ref.dtype)     # single lane-dense store
    stat_ref[0, 0:1, :] = jnp.sum(a, axis=0, keepdims=True)
    stat_ref[0, 1:2, :] = jnp.sum(a * a, axis=0, keepdims=True)


def _cconvt_mask_kernel(x_ref, w_ref, b_ref, out_ref, acc_ref,
                        *, NHq, max_dh, WC):
    """last_layer=True path: conv + bias + x/(|x|+1e-8)*tanh(|x|), fully fused."""
    x = x_ref[...]
    acc_ref[...] = jnp.dot(x, w_ref[0, :, 0:WC],
                           preferred_element_type=jnp.float32)
    for dh in range(1, max_dh):
        y = jnp.dot(x, w_ref[0, :, dh * WC:(dh + 1) * WC],
                    preferred_element_type=jnp.float32)
        acc_ref[dh:NHq, :] += y[0:NHq - dh, :]
    v = acc_ref[...] + b_ref[...]                  # (N*Hq, WC) + (1, WC)
    m = jnp.abs(v)
    out_ref[0, :, :] = (v / (m + 1e-8) * jnp.tanh(m)).astype(out_ref.dtype)


# --------------------------- weight-slab builder -----------------------------

def build_conv_slab(params, *, W, Wq, max_dh, max_dw, sh, sw, C2,
                    compute_dtype=jnp.bfloat16):
    """Fused complex block-Toeplitz weight slab: (S, W*2Cin, max_dh*Wq*C2).

    Built with pad/reshape/broadcast/transpose only (no identity einsum).
    Depends only on the weights and static dims -> hoist/reuse when weights
    are static.
    """
    f32 = jnp.float32
    wr = params["w_real"].astype(f32)                  # (kH, kW, Cin, Cout)
    wi = params["w_imag"].astype(f32)
    kH, kW, Cin, Cout = wr.shape
    Ci2 = 2 * Cin
    S = sh * sw
    # complex 2x2 block structure; output lanes packed [real | imag | pad].
    top = jnp.concatenate([wr, wi], axis=-1)           # multiplies x_real
    bot = jnp.concatenate([-wi, wr], axis=-1)          # multiplies x_imag
    B = jnp.concatenate([top, bot], axis=2)            # (kH, kW, Ci2, 2*Cout)
    B = jnp.pad(B, ((0, sh * max_dh - kH), (0, sw * max_dw - kW),
                    (0, 0), (0, C2 - 2 * Cout)))
    B = B.reshape(max_dh, sh, max_dw, sw, Ci2, C2)     # kh=(dh,rh), kw=(dw,rw)
    Bq = jnp.transpose(B, (1, 3, 0, 2, 4, 5)).reshape(S, max_dh, max_dw, Ci2, C2)
    # width-direction banded Toeplitz (qw = w + dw) via the pad/flatten trick.
    Bt = jnp.transpose(Bq, (0, 3, 1, 4, 2))            # (S, Ci2, max_dh, C2, max_dw)
    Bp = jnp.pad(Bt, ((0, 0),) * 4 + ((0, Wq + 1 - max_dw),))
    Bb = jnp.broadcast_to(Bp[:, :, :, :, None, :],
                          (S, Ci2, max_dh, C2, W, Wq + 1))
    T = Bb.reshape(S, Ci2, max_dh, C2, W * (Wq + 1))[..., :W * Wq]
    T = T.reshape(S, Ci2, max_dh, C2, W, Wq)
    A = jnp.transpose(T, (0, 4, 1, 2, 5, 3))           # (S, W, Ci2, max_dh, Wq, C2)
    return A.reshape(S, W * Ci2, max_dh * Wq * C2).astype(compute_dtype)


# ------------------------------- wrapper -------------------------------------

def decoder_forward(x, params, *, filter_size=(7, 5), stride=(2, 2),
                    padding=(0, 0), output_size=None, last_layer=False,
                    eps=1e-5, slope=0.01, compute_dtype=jnp.bfloat16,
                    slab=None):
    """x: (N, Cin, H, W, 2) -> (N, Cout, Hout, Wout, 2), matching torch layout."""
    assert padding == (0, 0)          # module default; nonzero padding unused
    N, Cin, H, W, two = x.shape
    assert two == 2
    kH, kW = filter_size
    sh, sw = stride
    Cout = params["w_real"].shape[-1]
    nat_h = (H - 1) * sh + kH
    nat_w = (W - 1) * sw + kW
    if output_size is None:
        output_size = (nat_h, nat_w)
    Hout, Wout = output_size
    # torch ConvTranspose2d(output_size=...) requires natural <= size < natural+stride
    assert nat_h <= Hout < nat_h + sh and nat_w <= Wout < nat_w + sw

    f32 = jnp.float32
    C2 = _round_up(2 * Cout, 128)             # [real | imag | pad] in ONE lane group
    max_dh = -(-kH // sh)
    max_dw = -(-kW // sw)
    Hq = max(H + max_dh - 1, -(-Hout // sh))  # sub-plane spatial extents
    Wq = max(W + max_dw - 1, -(-Wout // sw))
    WC = Wq * C2
    S = sh * sw
    Ci2 = 2 * Cin
    NHq = N * Hq

    # ---- glue: LHS (N*Hq, W*2Cin); per-batch rows [H, Hq) are zero ----------
    xr = jnp.transpose(x[..., 0], (0, 2, 3, 1))            # (N, H, W, Cin)
    xi = jnp.transpose(x[..., 1], (0, 2, 3, 1))
    x2 = jnp.concatenate([xr, xi], axis=-1).reshape(N, H, W * Ci2)
    x2 = jnp.pad(x2, ((0, 0), (0, Hq - H), (0, 0)))
    x2 = x2.reshape(NHq, W * Ci2).astype(compute_dtype)

    # ---- fused block-Toeplitz weights (hoistable when weights are static) ---
    if slab is None:
        slab = build_conv_slab(params, W=W, Wq=Wq, max_dh=max_dh,
                               max_dw=max_dw, sh=sh, sw=sw, C2=C2,
                               compute_dtype=compute_dtype)

    def pack_c2(re, im):                        # [real | imag | zero pad] vector
        v = jnp.concatenate([re.astype(f32), im.astype(f32)])
        return jnp.pad(v, (0, C2 - 2 * Cout))

    x_spec = pl.BlockSpec((NHq, W * Ci2), lambda s: (0, 0))     # resident LHS
    w_spec = pl.BlockSpec((1, W * Ci2, max_dh * WC), lambda s: (s, 0, 0))
    out_spec = pl.BlockSpec((1, NHq, WC), lambda s: (s, 0, 0))
    conv_cp = pltpu.CompilerParams(
        dimension_semantics=("parallel",),        # S outermost -> both v7x TCs
        vmem_limit_bytes=32 * 1024 * 1024)        # explicit guard (v7x: 64 MiB phys)
    acc_scratch = pltpu.VMEM((NHq, WC), f32)

    if last_layer:
        bias = jnp.tile(pack_c2(params["b_real"] - params["b_imag"],
                                params["b_real"] + params["b_imag"]),
                        (Wq,)).reshape(1, WC)
        kern = functools.partial(_cconvt_mask_kernel, NHq=NHq, max_dh=max_dh,
                                 WC=WC)
        y = pl.pallas_call(
            kern, out_shape=jax.ShapeDtypeStruct((S, NHq, WC), f32),
            grid=(S,),
            in_specs=[x_spec, w_spec,
                      pl.BlockSpec((1, WC), lambda s: (0, 0))],
            out_specs=out_spec,
            scratch_shapes=[acc_scratch],
            compiler_params=conv_cp,
        )(x2, slab, bias)
        z = y.reshape(S, N, Hq, Wq, C2)
    else:
        kern = functools.partial(_cconvt_stats_kernel, NHq=NHq, max_dh=max_dh,
                                 WC=WC)
        conv, stats = pl.pallas_call(
            kern,
            out_shape=(jax.ShapeDtypeStruct((S, NHq, WC), jnp.bfloat16),
                       jax.ShapeDtypeStruct((S, 2, WC), f32)),
            grid=(S,),
            in_specs=[x_spec, w_spec],
            out_specs=(out_spec,
                       pl.BlockSpec((1, 2, WC), lambda s: (s, 0, 0))),
            scratch_shapes=[acc_scratch],
            compiler_params=conv_cp,
        )(x2, slab)

        # Training-mode batch statistics.  The in-kernel sums run over the full
        # (Hq, Wq) sub-plane grid; every position outside the true Hout x Wout
        # output is EXACTLY zero (zero-padded kernel rows/cols, zero LHS rows,
        # and no bias before the stats), so dividing by N*Hout*Wout is exact.
        # The conv bias is dropped because it cancels under batch-norm (valid
        # in training mode only).
        # TODO(synk): running-stats / eval-mode BN path not implemented.
        sums = stats.reshape(S, 2, Wq, C2).sum(axis=(0, 2))      # (2, C2)
        count = float(N * Hout * Wout)
        mean = sums[0] / count
        var = jnp.maximum(sums[1] / count - mean * mean, 0.0)
        gamma = pack_c2(params["bn_gamma_real"], params["bn_gamma_imag"])
        beta = pack_c2(params["bn_beta_real"], params["bn_beta_imag"])
        scale = gamma * lax.rsqrt(var + eps)
        shift = beta - mean * scale

        # Folded-BN affine + LeakyReLU in plain jnp: XLA fuses it with the
        # de-interleave / crop / re-pack below (no standalone epilogue pass).
        z = conv.reshape(S, N, Hq, Wq, C2).astype(f32) * scale + shift
        z = jnp.where(z >= 0, z, slope * z)

    # ---- glue: sub-pixel de-interleave + crop + NCHW(+complex) re-pack ------
    z = z.reshape(sh, sw, N, Hq, Wq, C2)
    z = jnp.transpose(z, (2, 3, 0, 4, 1, 5)).reshape(N, Hq * sh, Wq * sw, C2)
    z = z[:, :Hout, :Wout, :]
    out = jnp.stack([z[..., :Cout], z[..., Cout:2 * Cout]], axis=-1)
    return jnp.transpose(out, (0, 3, 1, 2, 4))        # (N, Cout, Hout, Wout, 2)


# ----------------------- pure-JAX reference (for checking) ------------------

def _convt_nhwc_ref(x, w, stride):
    N, H, W, _ = x.shape
    kH, kW, _, Cout = w.shape
    sh, sw = stride
    Hout = (H - 1) * sh + kH
    Wout = (W - 1) * sw + kW
    out = jnp.zeros((N, Hout, Wout, Cout), jnp.float32)
    for kh in range(kH):
        for kw in range(kW):
            contrib = jnp.einsum('nhwc,cd->nhwd', x, w[kh, kw],
                                 precision='highest')
            out = out.at[:, kh:kh + (H - 1) * sh + 1:sh,
                            kw:kw + (W - 1) * sw + 1:sw, :].add(contrib)
    return out


def decoder_forward_ref(x, params, *, filter_size=(7, 5), stride=(2, 2),
                        last_layer=False, eps=1e-5, slope=0.01,
                        compute_dtype=jnp.float32):
    xr = jnp.transpose(x[..., 0], (0, 2, 3, 1)).astype(compute_dtype).astype(jnp.float32)
    xi = jnp.transpose(x[..., 1], (0, 2, 3, 1)).astype(compute_dtype).astype(jnp.float32)
    wr = params["w_real"].astype(compute_dtype).astype(jnp.float32)
    wi = params["w_imag"].astype(compute_dtype).astype(jnp.float32)
    br, bi = params["b_real"], params["b_imag"]
    cr = _convt_nhwc_ref(xr, wr, stride) - _convt_nhwc_ref(xi, wi, stride) + (br - bi)
    ci = _convt_nhwc_ref(xr, wi, stride) + _convt_nhwc_ref(xi, wr, stride) + (br + bi)
    if not last_layer:
        def bn(v, g, b):
            m = jnp.mean(v, axis=(0, 1, 2), keepdims=True)
            var = jnp.mean(jnp.square(v - m), axis=(0, 1, 2), keepdims=True)
            y = (v - m) / jnp.sqrt(var + eps) * g + b
            return jnp.where(y >= 0, y, slope * y)
        yr = bn(cr, params["bn_gamma_real"], params["bn_beta_real"])
        yi = bn(ci, params["bn_gamma_imag"], params["bn_beta_imag"])
    else:
        def mask(v):
            a = jnp.abs(v)
            return v / (a + 1e-8) * jnp.tanh(a)
        yr, yi = mask(cr), mask(ci)
    out = jnp.stack([yr, yi], axis=-1)
    return jnp.transpose(out, (0, 3, 1, 2, 4))


if __name__ == "__main__":
    key = jax.random.PRNGKey(0)
    N, Cin, H, W = 2, 2, 6, 5
    Cout, (kH, kW), (sh, sw) = 45, (7, 5), (2, 2)

    k_x, k_wr, k_wi, k_br, k_bi = jax.random.split(key, 5)
    x = jax.random.normal(k_x, (N, Cin, H, W, 2), jnp.float32)

    # Deterministic synthetic init (xavier-uniform-style); not a checkpoint load.
    fan_in, fan_out = Cin * kH * kW, Cout * kH * kW
    bound = (6.0 / (fan_in + fan_out)) ** 0.5
    params = {
        "w_real": jax.random.uniform(k_wr, (kH, kW, Cin, Cout), jnp.float32,
                                     -bound, bound),
        "w_imag": jax.random.uniform(k_wi, (kH, kW, Cin, Cout), jnp.float32,
                                     -bound, bound),
        "b_real": jax.random.uniform(k_br, (Cout,), jnp.float32, -0.1, 0.1),
        "b_imag": jax.random.uniform(k_bi, (Cout,), jnp.float32, -0.1, 0.1),
        "bn_gamma_real": jnp.ones((Cout,), jnp.float32),  # BatchNorm2d defaults
        "bn_beta_real": jnp.zeros((Cout,), jnp.float32),
        "bn_gamma_imag": jnp.ones((Cout,), jnp.float32),
        "bn_beta_imag": jnp.zeros((Cout,), jnp.float32),
    }

    output_size = ((H - 1) * sh + kH, (W - 1) * sw + kW)   # (17, 13)

    for last_layer in (False, True):
        out = decoder_forward(x, params, filter_size=(kH, kW), stride=(sh, sw),
                              output_size=output_size, last_layer=last_layer,
                              compute_dtype=jnp.bfloat16)
        out = jax.block_until_ready(out)
        ref = decoder_forward_ref(x, params, filter_size=(kH, kW),
                                  stride=(sh, sw), last_layer=last_layer,
                                  compute_dtype=jnp.bfloat16)
        assert out.shape == (N, Cout, output_size[0], output_size[1], 2), out.shape
        err = float(jnp.max(jnp.abs(out - ref)))
        # BN path stores the conv intermediate in bf16 -> slightly looser tol.
        tol = 2e-3 if last_layer else 3e-2
        assert err < tol, (last_layer, err)
    print("KERNEL_OK")
</pallas_src>

<mosaic_0001>
module attributes {stable_mosaic.version = 11 : i64} {
  func.func @_cconvt_stats_kernel(%arg0: i32, %arg1: memref<18x20xbf16, #tpu.memory_space<vmem>>, %arg2: memref<1x20x3584xbf16, #tpu.memory_space<vmem>>, %arg3: memref<1x18x896xbf16, #tpu.memory_space<vmem>>, %arg4: memref<1x2x896xf32, #tpu.memory_space<vmem>>, %arg5: memref<18x896xf32, #tpu.memory_space<vmem>>) attributes {dimension_semantics = [#tpu.dimension_semantics<parallel>], iteration_bounds = array<i64: 4>, scalar_prefetch = 0 : i64, scratch_operands = 1 : i64, tpu.core_type = #tpu.core_type<tc>, window_params = [{pipeline_mode = #tpu.pipeline_mode<synchronous>, transform_indices = @transform_0, window_bounds = array<i64: 18, 20>}, {transform_indices = @transform_1, window_bounds = array<i64: 1, 20, 3584>}, {transform_indices = @transform_2, window_bounds = array<i64: 1, 18, 896>}, {transform_indices = @transform_3, window_bounds = array<i64: 1, 2, 896>}]} {
    %c0 = arith.constant 0 : index
    %c0_0 = arith.constant 0 : index
    %0 = vector.load %arg1[%c0, %c0_0] : memref<18x20xbf16, #tpu.memory_space<vmem>>, vector<18x20xbf16>
    %c0_1 = arith.constant 0 : index
    %c0_2 = arith.constant 0 : index
    %c0_3 = arith.constant 0 : index
    %1 = vector.load %arg2[%c0_1, %c0_2, %c0_3] : memref<1x20x3584xbf16, #tpu.memory_space<vmem>>, vector<1x20x896xbf16>
    %2 = vector.shape_cast %1 : vector<1x20x896xbf16> to vector<20x896xbf16>
    %cst = arith.constant dense<0.000000e+00> : vector<18x896xf32>
    %3 = tpu.matmul %0, %2, %cst {dimension_numbers = #tpu.dot_dimension_numbers<[1], [0], [0], [1], [0, 0, 1, 1], [], []>} : vector<18x20xbf16>, vector<20x896xbf16>, vector<18x896xf32> -> vector<18x896xf32>
    %c0_4 = arith.constant 0 : index
    %c0_5 = arith.constant 0 : index
    %4 = vector.load %arg5[%c0_4, %c0_5] : memref<18x896xf32, #tpu.memory_space<vmem>>, vector<18x896xf32>
    tpu.vector_store %arg5[%c0_4, %c0_5], %3 {strides = array<i32>} : memref<18x896xf32, #tpu.memory_space<vmem>>, vector<18x896xf32>,
    %c0_6 = arith.constant 0 : index
    %c0_7 = arith.constant 0 : index
    %c896 = arith.constant 896 : index
    %5 = vector.load %arg2[%c0_6, %c0_7, %c896] : memref<1x20x3584xbf16, #tpu.memory_space<vmem>>, vector<1x20x896xbf16>
    %6 = vector.shape_cast %5 : vector<1x20x896xbf16> to vector<20x896xbf16>
    %cst_8 = arith.constant dense<0.000000e+00> : vector<18x896xf32>
    %7 = tpu.matmul %0, %6, %cst_8 {dimension_numbers = #tpu.dot_dimension_numbers<[1], [0], [0], [1], [0, 0, 1, 1], [], []>} : vector<18x20xbf16>, vector<20x896xbf16>, vector<18x896xf32> -> vector<18x896xf32>
    %c1 = arith.constant 1 : index
    %c0_9 = arith.constant 0 : index
    %8 = vector.load %arg5[%c1, %c0_9] : memref<18x896xf32, #tpu.memory_space<vmem>>, vector<17x896xf32>
    %9 = vector.extract_strided_slice %7 {offsets = [0, 0], sizes = [17, 896], strides = [1, 1]} : vector<18x896xf32> to vector<17x896xf32>
    %10 = arith.addf %8, %9 : vector<17x896xf32>
    %c1_10 = arith.constant 1 : index
    %c0_11 = arith.constant 0 : index
    %11 = vector.load %arg5[%c1_10, %c0_11] : memref<18x896xf32, #tpu.memory_space<vmem>>, vector<17x896xf32>
    tpu.vector_store %arg5[%c1_10, %c0_11], %10 {strides = array<i32>} : memref<18x896xf32, #tpu.memory_space<vmem>>, vector<17x896xf32>,
    %c0_12 = arith.constant 0 : index
    %c0_13 = arith.constant 0 : index
    %c1792 = arith.constant 1792 : index
    %12 = vector.load %arg2[%c0_12, %c0_13, %c1792] : memref<1x20x3584xbf16, #tpu.memory_space<vmem>>, vector<1x20x896xbf16>
    %13 = vector.shape_cast %12 : vector<1x20x896xbf16> to vector<20x896xbf16>
    %cst_14 = arith.constant dense<0.000000e+00> : vector<18x896xf32>
    %14 = tpu.matmul %0, %13, %cst_14 {dimension_numbers = #tpu.dot_dimension_numbers<[1], [0], [0], [1], [0, 0, 1, 1], [], []>} : vector<18x20xbf16>, vector<20x896xbf16>, vector<18x896xf32> -> vector<18x896xf32>
    %c2 = arith.constant 2 : index
    %c0_15 = arith.constant 0 : index
    %15 = vector.load %arg5[%c2, %c0_15] : memref<18x896xf32, #tpu.memory_space<vmem>>, vector<16x896xf32>
    %16 = vector.extract_strided_slice %14 {offsets = [0, 0], sizes = [16, 896], strides = [1, 1]} : vector<18x896xf32> to vector<16x896xf32>
    %17 = arith.addf %15, %16 : vector<16x896xf32>
    %c2_16 = arith.constant 2 : index
    %c0_17 = arith.constant 0 : index
    %18 = vector.load %arg5[%c2_16, %c0_17] : memref<18x896xf32, #tpu.memory_space<vmem>>, vector<16x896xf32>
    tpu.vector_store %arg5[%c2_16, %c0_17], %17 {strides = array<i32>} : memref<18x896xf32, #tpu.memory_space<vmem>>, vector<16x896xf32>,
    %c0_18 = arith.constant 0 : index
    %c0_19 = arith.constant 0 : index
    %c2688 = arith.constant 2688 : index
    %19 = vector.load %arg2[%c0_18, %c0_19, %c2688] : memref<1x20x3584xbf16, #tpu.memory_space<vmem>>, vector<1x20x896xbf16>
    %20 = vector.shape_cast %19 : vector<1x20x896xbf16> to vector<20x896xbf16>
    %cst_20 = arith.constant dense<0.000000e+00> : vector<18x896xf32>
    %21 = tpu.matmul %0, %20, %cst_20 {dimension_numbers = #tpu.dot_dimension_numbers<[1], [0], [0], [1], [0, 0, 1, 1], [], []>} : vector<18x20xbf16>, vector<20x896xbf16>, vector<18x896xf32> -> vector<18x896xf32>
    %c3 = arith.constant 3 : index
    %c0_21 = arith.constant 0 : index
    %22 = vector.load %arg5[%c3, %c0_21] : memref<18x896xf32, #tpu.memory_space<vmem>>, vector<15x896xf32>
    %23 = vector.extract_strided_slice %21 {offsets = [0, 0], sizes = [15, 896], strides = [1, 1]} : vector<18x896xf32> to vector<15x896xf32>
    %24 = arith.addf %22, %23 : vector<15x896xf32>
    %c3_22 = arith.constant 3 : index
    %c0_23 = arith.constant 0 : index
    %25 = vector.load %arg5[%c3_22, %c0_23] : memref<18x896xf32, #tpu.memory_space<vmem>>, vector<15x896xf32>
    tpu.vector_store %arg5[%c3_22, %c0_23], %24 {strides = array<i32>} : memref<18x896xf32, #tpu.memory_space<vmem>>, vector<15x896xf32>,
    %c0_24 = arith.constant 0 : index
    %c0_25 = arith.constant 0 : index
    %26 = vector.load %arg5[%c0_24, %c0_25] : memref<18x896xf32, #tpu.memory_space<vmem>>, vector<18x896xf32>
    %27 = arith.truncf %26 : vector<18x896xf32> to vector<18x896xbf16>
    %c0_26 = arith.constant 0 : index
    %c0_27 = arith.constant 0 : index
    %c0_28 = arith.constant 0 : index
    %28 = vector.load %arg3[%c0_26, %c0_27, %c0_28] : memref<1x18x896xbf16, #tpu.memory_space<vmem>>, vector<1x18x896xbf16>
    %29 = vector.shape_cast %28 : vector<1x18x896xbf16> to vector<18x896xbf16>
    %30 = vector.shape_cast %27 : vector<18x896xbf16> to vector<1x18x896xbf16>
    tpu.vector_store %arg3[%c0_26, %c0_27, %c0_28], %30 {strides = array<i32>} : memref<1x18x896xbf16, #tpu.memory_space<vmem>>, vector<1x18x896xbf16>,
    %cst_29 = arith.constant dense<0.000000e+00> : vector<896xf32>
    %31 = vector.multi_reduction <add>, %26, %cst_29 [0] : vector<18x896xf32> to vector<896xf32>
    %32 = vector.shape_cast %31 : vector<896xf32> to vector<1x896xf32>
    %c0_30 = arith.constant 0 : index
    %c0_31 = arith.constant 0 : index
    %c0_32 = arith.constant 0 : index
    %33 = vector.load %arg4[%c0_30, %c0_31, %c0_32] : memref<1x2x896xf32, #tpu.memory_space<vmem>>, vector<1x1x896xf32>
    %34 = vector.shape_cast %33 : vector<1x1x896xf32> to vector<1x896xf32>
    %35 = vector.shape_cast %32 : vector<1x896xf32> to vector<1x1x896xf32>
    tpu.vector_store %arg4[%c0_30, %c0_31, %c0_32], %35 {strides = array<i32>} : memref<1x2x896xf32, #tpu.memory_space<vmem>>, vector<1x1x896xf32>,
    %36 = arith.mulf %26, %26 : vector<18x896xf32>
    %cst_33 = arith.constant dense<0.000000e+00> : vector<896xf32>
    %37 = vector.multi_reduction <add>, %36, %cst_33 [0] : vector<18x896xf32> to vector<896xf32>
    %38 = vector.shape_cast %37 : vector<896xf32> to vector<1x896xf32>
    %c0_34 = arith.constant 0 : index
    %c1_35 = arith.constant 1 : index
    %c0_36 = arith.constant 0 : index
    %39 = vector.load %arg4[%c0_34, %c1_35, %c0_36] : memref<1x2x896xf32, #tpu.memory_space<vmem>>, vector<1x1x896xf32>
    %40 = vector.shape_cast %39 : vector<1x1x896xf32> to vector<1x896xf32>
    %41 = vector.shape_cast %38 : vector<1x896xf32> to vector<1x1x896xf32>
    tpu.vector_store %arg4[%c0_34, %c1_35, %c0_36], %41 {strides = array<i32>} : memref<1x2x896xf32, #tpu.memory_space<vmem>>, vector<1x1x896xf32>,
    return
  }
  func.func @transform_0(%arg0: i32) -> (i32, i32) {
    %c0_i32 = arith.constant 0 : i32
    %c0_i32_0 = arith.constant 0 : i32
    %c0_i32_1 = arith.constant 0 : i32
    return %c0_i32, %c0_i32_0 : i32, i32
  }
  func.func @transform_1(%arg0: i32) -> (i32, i32, i32) {
    %c0_i32 = arith.constant 0 : i32
    %c0_i32_0 = arith.constant 0 : i32
    %c0_i32_1 = arith.constant 0 : i32
    return %arg0, %c0_i32, %c0_i32_0 : i32, i32, i32
  }
  func.func @transform_2(%arg0: i32) -> (i32, i32, i32) {
    %c0_i32 = arith.constant 0 : i32
    %c0_i32_0 = arith.constant 0 : i32
    %c0_i32_1 = arith.constant 0 : i32
    return %arg0, %c0_i32, %c0_i32_0 : i32, i32, i32
  }
  func.func @transform_3(%arg0: i32) -> (i32, i32, i32) {
    %c0_i32 = arith.constant 0 : i32
    %c0_i32_0 = arith.constant 0 : i32
    %c0_i32_1 = arith.constant 0 : i32
    return %arg0, %c0_i32, %c0_i32_0 : i32, i32, i32
  }
}

</mosaic_0001>

<llo_original>
// kernel: tpu_custom_call.1
$region0: #{tpu_custom_call.1}
  #allocation0 [shape = 'u32[]', space=smem, size = 0x4, offset = 0x4, fixed_abs, tag = 'smem constant byte address 0x4 - core index']
  #allocation1 [shape = 'u32[144,128]{1,0:T(1,128)}', space=vmem, size = 0x12000, scoped, tag = 'internal scratch']
  #allocation2 [shape = 'f32[18,896]{1,0:T(8,128)}', space=vmem, size = 0x15000, scoped, tag = 'scratch operand']
  %s0 = inlined_call_operand.vmem [shape: bf16[18,20], index: 0, kind: input, shape index: {}]
  %s1 = inlined_call_operand.vmem [shape: bf16[4,20,3584], index: 1, kind: input, shape index: {}]
  %s2 = inlined_call_operand.vmem [shape: bf16[4,18,896], index: 2, kind: output, shape index: {0}]
  %s3 = inlined_call_operand.hbm [shape: f32[4,2,896], index: 3, kind: output, shape index: {1}]
  %4 = xla_tuple %s2, %s3
  %s5 = sld [smem:[#allocation0]]
  $region49: #{tpu_custom_call.1} parent=0
    _
  %s7 = ssub.s32 1, %s5
  %s8 = scalar_select 0, %s7, %s5
  $region1: #{tpu_custom_call.1} parent=0
    #allocation3 [shape = 'u8[14336]{0}', space=vmem, size = 0x3800, scoped, tag = 'output window, operand 1']
    #allocation4 [shape = 's32[2]{0}', space=sflag, size = 0x8, scoped, tag = 'scoped memory for tpu_custom_call.1']
    %9 = vsyncpa [#allocation4], 0
    %s10 = scalar_lea.sflag [#allocation4], 1
    %11 = vsyncpa %s10, 0
    loop: start=0, step=1, limit=6
    $region2: #{tpu_custom_call.1} parent=1 // loop_pre_header
      _
    $region3: #{tpu_custom_call.1} parent=1 // loop_header
      %s13 = sphi 0, %s17
      %p14 = scmp.ge.s32.totalorder %s13, 6
      %s21 = sphi 0, %s21
      %s23 = sphi 0, %s21
      %s24 = sphi 0, %s23
      %s38 = sphi 0, %s24
      %s44 = sphi 0, %s46
      %s47 = sphi 0, %s44
      %s48 = sphi 0, %s47
      %s64 = sphi 0, %s48
      %s70 = sphi 0, %s72
      %s73 = sphi 0, %s70
      %s74 = sphi 0, %s73
      %s90 = sphi 0, %s74
      %s96 = sphi 0, %s98
      %s99 = sphi 0, %s96
      %s100 = sphi 0, %s99
      %s116 = sphi 0, %s100
    $region4: #{tpu_custom_call.1} parent=1 // loop_header_branch
      %16 = sbr.rel (%p14) target = $region8
    $region5: #{tpu_custom_call.1} parent=1 // loop_body
      %s18 = ssub.s32 %s13, 1
      %s19 = ssub.s32 %s13, 2
      %s20 = sadd.s32 %s13, 1
      %s22 = sadd.s32 %s21, 1
      %p25 = scmp.eq.s32.totalorder %s13, 3
      %p26 = scmp.ne.s32.totalorder %s21, %s23
      %p27 = scmp.eq.s32.totalorder %s13, 0
      %p28 = por %p26, %p27
      %p29 = scmp.ne.s32.totalorder %s21, %s23
      %p30 = scmp.eq.s32.totalorder %s18, 3
      %p31 = por %p29, %p30
      %p32 = scmp.ne.s32.totalorder %s23, %s24
      %p33 = scmp.eq.s32.totalorder %s18, 0
      %p34 = por %p32, %p33
      %p35 = scmp.ne.s32.totalorder %s23, %s24
      %p36 = scmp.eq.s32.totalorder %s19, 3
      %p37 = por %p35, %p36
      %p39 = scmp.ne.s32.totalorder %s24, %s38
      %p40 = scmp.eq.s32.totalorder %s19, 0
      %p41 = por %p39, %p40
      %s42 = ssub.s32 %s13, %s20
      %p43 = scmp.eq.s32.totalorder %s42, 0
      %s45 = sadd.s32 %s44, 1
      %s46 = scalar_select %p43, %s44, %s45
      %p49 = pneg %p43
      %p50 = scmp.eq.s32.totalorder %s13, 3
      %p51 = por %p49, %p50
      %p52 = scmp.ne.s32.totalorder %s44, %s47
      %p53 = scmp.eq.s32.totalorder %s13, 0
      %p54 = por %p52, %p53
      %p55 = scmp.ne.s32.totalorder %s44, %s47
      %p56 = scmp.eq.s32.totalorder %s18, 3
      %p57 = por %p55, %p56
      %p58 = scmp.ne.s32.totalorder %s47, %s48
      %p59 = scmp.eq.s32.totalorder %s18, 0
      %p60 = por %p58, %p59
      %p61 = scmp.ne.s32.totalorder %s47, %s48
      %p62 = scmp.eq.s32.totalorder %s19, 3
      %p63 = por %p61, %p62
      %p65 = scmp.ne.s32.totalorder %s48, %s64
      %p66 = scmp.eq.s32.totalorder %s19, 0
      %p67 = por %p65, %p66
      %s68 = ssub.s32 %s13, %s20
      %p69 = scmp.eq.s32.totalorder %s68, 0
      %s71 = sadd.s32 %s70, 1
      %s72 = scalar_select %p69, %s70, %s71
      %p75 = pneg %p69
      %p76 = scmp.eq.s32.totalorder %s13, 3
      %p77 = por %p75, %p76
      %p78 = scmp.ne.s32.totalorder %s70, %s73
      %p79 = scmp.eq.s32.totalorder %s13, 0
      %p80 = por %p78, %p79
      %p81 = scmp.ne.s32.totalorder %s70, %s73
      %p82 = scmp.eq.s32.totalorder %s18, 3
      %p83 = por %p81, %p82
      %p84 = scmp.ne.s32.totalorder %s73, %s74
      %p85 = scmp.eq.s32.totalorder %s18, 0
      %p86 = por %p84, %p85
      %p87 = scmp.ne.s32.totalorder %s73, %s74
      %p88 = scmp.eq.s32.totalorder %s19, 3
      %p89 = por %p87, %p88
      %p91 = scmp.ne.s32.totalorder %s74, %s90
      %p92 = scmp.eq.s32.totalorder %s19, 0
      %p93 = por %p91, %p92
      %s94 = ssub.s32 %s13, %s20
      %p95 = scmp.eq.s32.totalorder %s94, 0
      %s97 = sadd.s32 %s96, 1
      %s98 = scalar_select %p95, %s96, %s97
      %p101 = pneg %p95
      %p102 = scmp.eq.s32.totalorder %s13, 3
      %p103 = por %p101, %p102
      %p104 = scmp.ne.s32.totalorder %s96, %s99
      %p105 = scmp.eq.s32.totalorder %s13, 0
      %p106 = por %p104, %p105
      %p107 = scmp.ne.s32.totalorder %s96, %s99
      %p108 = scmp.eq.s32.totalorder %s18, 3
      %p109 = por %p107, %p108
      %p110 = scmp.ne.s32.totalorder %s99, %s100
      %p111 = scmp.eq.s32.totalorder %s18, 0
      %p112 = por %p110, %p111
      %p113 = scmp.ne.s32.totalorder %s99, %s100
      %p114 = scmp.eq.s32.totalorder %s19, 3
      %p115 = por %p113, %p114
      %p117 = scmp.ne.s32.totalorder %s100, %s116
      %p118 = scmp.eq.s32.totalorder %s19, 0
      %p119 = por %p117, %p118
      %p120 = scmp.le.s32.totalorder 1, %s13
      %p121 = scmp.lt.s32.totalorder %s13, 5
      %p122 = pnand %p120, %p121
      %p123 = pneg %p122
      // Predicated region
      $region9: #{tpu_custom_call.1} parent=5 // pred_check
        _
      $region10: #{tpu_custom_call.1} parent=5 // pred_check_branch
        %125 = sbr.rel (%p122) target = $region12
      $region11: #{tpu_custom_call.1} parent=5 // pred_region
        %s126 = ssub.s32 %s13, 1
        // Predicated region
        $region13: #{tpu_custom_call.1} parent=11 // pred_check
          %p127 = pneg %p34
        $region14: #{tpu_custom_call.1} parent=11 // pred_check_branch
          %129 = sbr.rel (%p127) target = $region16
        $region15: #{tpu_custom_call.1} parent=11 // pred_region
          _
        $region16: #{tpu_custom_call.1} parent=11 // pred_fallthru
          _
      $region12: #{tpu_custom_call.1} parent=5 // pred_fallthru
        _
      %p130 = scmp.lt.s32.totalorder %s13, 4
      // Predicated region
      $region17: #{tpu_custom_call.1} parent=5 // pred_check
        %p131 = pneg %p130
      $region18: #{tpu_custom_call.1} parent=5 // pred_check_branch
        %133 = sbr.rel (%p131) target = $region20
      $region19: #{tpu_custom_call.1} parent=5 // pred_region
        // Predicated region
        $region21: #{tpu_custom_call.1} parent=19 // pred_check
          %p134 = pneg %p54
        $region22: #{tpu_custom_call.1} parent=19 // pred_check_branch
          %136 = sbr.rel (%p134) target = $region24
        $region23: #{tpu_custom_call.1} parent=19 // pred_region
          %p137 = scmp.lt.s32.totalorder %s13, 3
          %s138 = scalar_select %p137, %s13, 3
          %s139 = smul.addr %s138, 84
          %s140 = smul.addr %s139, 4
          %s141 = scalar_lea.vmem %s1, %s140
        $region24: #{tpu_custom_call.1} parent=19 // pred_fallthru
          _
      $region20: #{tpu_custom_call.1} parent=5 // pred_fallthru
        _
      %p142 = scmp.le.s32.totalorder 1, %s13
      %p143 = scmp.lt.s32.totalorder %s13, 5
      %p144 = pnand %p142, %p143
      %p145 = pneg %p144
      // Predicated region
      $region25: #{tpu_custom_call.1} parent=5 // pred_check
        _
      $region26: #{tpu_custom_call.1} parent=5 // pred_check_branch
        %147 = sbr.rel (%p144) target = $region28
      $region27: #{tpu_custom_call.1} parent=5 // pred_region
        %s148 = ssub.s32 %s13, 1
        %p149 = pneg %p34
        %p150 = pneg %p31
        %p151 = scmp.lt.s32.totalorder %s18, 3
        %s152 = scalar_select %p151, %s18, 3
        %s153 = smul.addr %s152, 84
        %s154 = smul.addr %s153, 4
        %s155 = scalar_lea.vmem %s1, %s154
        %p156 = pneg %p60
        %p157 = pneg %p57
        %p158 = pneg %p86
        %p159 = pneg %p83
        %p160 = scmp.lt.s32.totalorder %s18, 3
        %s161 = scalar_select %p160, %s18, 3
        %s162 = smul.addr %s161, 21
        %s163 = smul.addr %s162, 4
        %s164 = scalar_lea.vmem %s2, %s163
        %p165 = pneg %p112
        %p166 = pneg %p109
        %s167 = sand.u32 %s99, 1
        %s168 = scalar_lea.sflag [#allocation4], %s167
        %s169 = sand.u32 %s99, 1
        %s170 = smul.addr %s169, 14
        %s171 = scalar_lea.vmem [#allocation3], %s170
        %p172 = scmp.lt.s32.totalorder %s18, 3
        %s173 = scalar_select %p172, %s18, 3
        %s174 = smul.addr %s173, 84
        %s175 = smul.addr %s174, 4
        %s176 = scalar_lea.vmem %s1, %s175
        %p177 = scmp.lt.s32.totalorder %s18, 3
        %s178 = scalar_select %p177, %s18, 3
        %s179 = smul.addr %s178, 21
        %s180 = smul.addr %s179, 4
        %s181 = scalar_lea.vmem %s2, %s180
        %v183 = vld [vmem:[%s0] sm:$0xf]
        %v184 = vld [vmem:[%s0 + $0x4] sm:$0xf]
        %v185 = vld [vmem:[%s0 + $0x8] sm:$0x1]
        %v186 = vld [vmem:[%s176] sm:$0xff]
        %v187 = vld [vmem:[%s176 + $0x8] sm:$0xff]
        %v188 = vld [vmem:[%s176 + $0x10] sm:$0xff]
        %v189 = vld [vmem:[%s176 + $0x18] sm:$0xf]
        %v190 = vld [vmem:[%s176 + $0x70] sm:$0xff]
        %v191 = vld [vmem:[%s176 + $0x78] sm:$0xff]
        %v192 = vld [vmem:[%s176 + $0x80] sm:$0xff]
        %v193 = vld [vmem:[%s176 + $0x88] sm:$0xf]
        %v194 = vld [vmem:[%s176 + $0xe0] sm:$0x33]
        %v195 = vld [vmem:[%s176 + $0xe8] sm:$0x33]
        %v196 = vld [vmem:[%s176 + $0xf0] sm:$0x33]
        %v197 = vld [vmem:[%s176 + $0xf8] sm:$0x3]
        %v201 = vunpack.c.l.b16 %v183
        %v202 = vunpack.c.l.b16 %v184
        %v203 = vunpack.c.l.b16 %v185
        %v204 = vpack.c.b16 %v202, %v201
        %v205 = vpack.c.b16 %v203, %v203
        %v218 = vunpack.c.l.b16 %v186
        %v219 = vunpack.c.h.b16 %v186
        %v220 = vunpack.c.l.b16 %v187
        %v221 = vunpack.c.h.b16 %v187
        %v222 = vunpack.c.l.b16 %v188
        %v223 = vunpack.c.h.b16 %v188
        %v224 = vunpack.c.l.b16 %v189
        %v225 = vunpack.c.l.b16 %v190
        %v226 = vunpack.c.h.b16 %v190
        %v227 = vunpack.c.l.b16 %v191
        %v228 = vunpack.c.h.b16 %v191
        %v229 = vunpack.c.l.b16 %v192
        %v230 = vunpack.c.h.b16 %v192
        %v231 = vunpack.c.l.b16 %v193
        %v232 = vunpack.c.l.b16 %v194
        %v233 = vunpack.c.h.b16 %v194
        %v234 = vunpack.c.l.b16 %v195
        %v235 = vunpack.c.h.b16 %v195
        %v236 = vunpack.c.l.b16 %v196
        %v237 = vunpack.c.h.b16 %v196
        %v238 = vunpack.c.l.b16 %v197
        %v239 = vpack.c.b16 %v225, %v218
        %v240 = vpack.c.b16 %v226, %v219
        %v241 = vpack.c.b16 %v227, %v220
        %v242 = vpack.c.b16 %v228, %v221
        %v243 = vpack.c.b16 %v229, %v222
        %v244 = vpack.c.b16 %v230, %v223
        %v245 = vpack.c.b16 %v231, %v224
        %v246 = vpack.c.b16 %v232, %v232
        %v247 = vpack.c.b16 %v233, %v233
        %v248 = vpack.c.b16 %v234, %v234
        %v249 = vpack.c.b16 %v235, %v235
        %v250 = vpack.c.b16 %v236, %v236
        %v251 = vpack.c.b16 %v237, %v237
        %v252 = vpack.c.b16 %v238, %v238
        %vm260 = vcmask 162816
        %v262 = vsel %vm260, %v204, 0
        %v265 = vsel %vm260, %v205, 0
        %vm267 = vcmask 1041408
        %v269 = vsel %vm267, %v246, 0
        %v272 = vsel %vm267, %v247, 0
        %v275 = vsel %vm267, %v248, 0
        %v278 = vsel %vm267, %v249, 0
        %v281 = vsel %vm267, %v250, 0
        %v284 = vsel %vm267, %v251, 0
        %v287 = vsel %vm267, %v252, 0
        %289 = vmatprep.subr.bf16.mxu0 %v240
        %290 = vmatpush1.bf16.msra.mxu0 %v239
        %291 = vmatprep.subr.bf16.mxu0 %v272
        %292 = vmatpush1.bf16.msra.mxu0 %v269
        %293 = vmatprep.subr.bf16.mxu0 0
        %294 = vmatpush1.bf16.msra.mxu0 0
        %295 = vmatprep.subr.bf16.mxu0 0
        %296 = vmatpush1.bf16.msra.mxu0 0
        %297 = vmatprep.subr.bf16.mxu0 0
        %298 = vmatpush1.bf16.msra.mxu0 0
        %299 = vmatprep.subr.bf16.mxu0 0
        %300 = vmatpush1.bf16.msra.mxu0 0
        %301 = vmatprep.subr.bf16.mxu0 0
        %302 = vmatpush1.bf16.msra.mxu0 0
        %303 = vmatprep.subr.bf16.mxu0 0
        %304 = vmatpush1.bf16.msra.mxu0 0
        %305 = vmatprep.subr.bf16.mxu0 0
        %306 = vmatpush1.bf16.msra.mxu0 0
        %307 = vmatprep.subr.bf16.mxu0 0
        %308 = vmatpush1.bf16.msra.mxu0 0
        %309 = vmatprep.subr.bf16.mxu0 0
        %310 = vmatpush1.bf16.msra.mxu0 0
        %311 = vmatprep.subr.bf16.mxu0 0
        %312 = vmatpush1.bf16.msra.mxu0 0
        %313 = vmatprep.subr.bf16.mxu0 0
        %314 = vmatpush1.bf16.msra.mxu0 0
        %315 = vmatprep.subr.bf16.mxu0 0
        %316 = vmatpush1.bf16.msra.mxu0 0
        %317 = vmatprep.subr.bf16.mxu0 0
        %318 = vmatpush1.bf16.msra.mxu0 0
        %319 = vmatprep.subr.bf16.mxu0 0
        %320 = vmatpush1.bf16.msra.mxu0 0
        %321 = vmatprep.mubr.bf16.mxu0 0
        %322 = vmatmul.mubr.bf16.gmra.mrb[0].mxu0 %v262
        %v323 = vpop.f32.mrb[0].mxu0
        %v324 = vadd.f32 0.0, %v323
        %v325 = vpop.f32.mrb[0].mxu0
        %v326 = vadd.f32 0.0, %v325
        %v327 = vpop.f32.mrb[0].mxu0
        %v328 = vadd.f32 0.0, %v327
        %v329 = vpop.f32.mrb[0].mxu0
        %v330 = vadd.f32 0.0, %v329
        %331 = vmatprep.mubr.bf16.mxu0 0
        %332 = vmatmul.mubr.bf16.gmra.mrb[0].mxu0 %v265
        %v333 = vpop.f32.mrb[0].mxu0
        %v334 = vadd.f32 0.0, %v333
        %v335 = vpop.f32.mrb[0].mxu0
        %v336 = vadd.f32 0.0, %v335
        %v337 = vpop.f32.mrb[0].mxu0
        %v338 = vpop.f32.mrb[0].mxu0
        %339 = vdwg.mxu0
        %340 = vmatprep.subr.bf16.mxu0 %v242
        %341 = vmatpush1.bf16.msra.mxu0 %v241
        %342 = vmatprep.subr.bf16.mxu0 %v278
        %343 = vmatpush1.bf16.msra.mxu0 %v275
        %344 = vmatprep.subr.bf16.mxu0 0
        %345 = vmatpush1.bf16.msra.mxu0 0
        %346 = vmatprep.subr.bf16.mxu0 0
        %347 = vmatpush1.bf16.msra.mxu0 0
        %348 = vmatprep.subr.bf16.mxu0 0
        %349 = vmatpush1.bf16.msra.mxu0 0
        %350 = vmatprep.subr.bf16.mxu0 0
        %351 = vmatpush1.bf16.msra.mxu0 0
        %352 = vmatprep.subr.bf16.mxu0 0
        %353 = vmatpush1.bf16.msra.mxu0 0
        %354 = vmatprep.subr.bf16.mxu0 0
        %355 = vmatpush1.bf16.msra.mxu0 0
        %356 = vmatprep.subr.bf16.mxu0 0
        %357 = vmatpush1.bf16.msra.mxu0 0
        %358 = vmatprep.subr.bf16.mxu0 0
        %359 = vmatpush1.bf16.msra.mxu0 0
        %360 = vmatprep.subr.bf16.mxu0 0
        %361 = vmatpush1.bf16.msra.mxu0 0
        %362 = vmatprep.subr.bf16.mxu0 0
        %363 = vmatpush1.bf16.msra.mxu0 0
        %364 = vmatprep.subr.bf16.mxu0 0
        %365 = vmatpush1.bf16.msra.mxu0 0
        %366 = vmatprep.subr.bf16.mxu0 0
        %367 = vmatpush1.bf16.msra.mxu0 0
        %368 = vmatprep.subr.bf16.mxu0 0
        %369 = vmatpush1.bf16.msra.mxu0 0
        %370 = vmatprep.subr.bf16.mxu0 0
        %371 = vmatpush1.bf16.msra.mxu0 0
        %372 = vmatprep.mubr.bf16.mxu0 0
        %373 = vmatmul.mubr.bf16.gmra.mrb[0].mxu0 %v262
        %v374 = vpop.f32.mrb[0].mxu0
        %v375 = vadd.f32 0.0, %v374
        %v376 = vpop.f32.mrb[0].mxu0
        %v377 = vadd.f32 0.0, %v376
        %v378 = vpop.f32.mrb[0].mxu0
        %v379 = vadd.f32 0.0, %v378
        %v380 = vpop.f32.mrb[0].mxu0
        %v381 = vadd.f32 0.0, %v380
        %382 = vmatprep.mubr.bf16.mxu0 0
        %383 = vmatmul.mubr.bf16.gmra.mrb[0].mxu0 %v265
        %v384 = vpop.f32.mrb[0].mxu0
        %v385 = vadd.f32 0.0, %v384
        %v386 = vpop.f32.mrb[0].mxu0
        %v387 = vadd.f32 0.0, %v386
        %v388 = vpop.f32.mrb[0].mxu0
        %v389 = vpop.f32.mrb[0].mxu0
        %390 = vdwg.mxu0
        %391 = vmatprep.subr.bf16.mxu0 %v244
        %392 = vmatpush1.bf16.msra.mxu0 %v243
        %393 = vmatprep.subr.bf16.mxu0 %v284
        %394 = vmatpush1.bf16.msra.mxu0 %v281
        %395 = vmatprep.subr.bf16.mxu0 0
        %396 = vmatpush1.bf16.msra.mxu0 0
        %397 = vmatprep.subr.bf16.mxu0 0
        %398 = vmatpush1.bf16.msra.mxu0 0
        %399 = vmatprep.subr.bf16.mxu0 0
        %400 = vmatpush1.bf16.msra.mxu0 0
        %401 = vmatprep.subr.bf16.mxu0 0
        %402 = vmatpush1.bf16.msra.mxu0 0
        %403 = vmatprep.subr.bf16.mxu0 0
        %404 = vmatpush1.bf16.msra.mxu0 0
        %405 = vmatprep.subr.bf16.mxu0 0
        %406 = vmatpush1.bf16.msra.mxu0 0
        %407 = vmatprep.subr.bf16.mxu0 0
        %408 = vmatpush1.bf16.msra.mxu0 0
        %409 = vmatprep.subr.bf16.mxu0 0
        %410 = vmatpush1.bf16.msra.mxu0 0
        %411 = vmatprep.subr.bf16.mxu0 0
        %412 = vmatpush1.bf16.msra.mxu0 0
        %413 = vmatprep.subr.bf16.mxu0 0
        %414 = vmatpush1.bf16.msra.mxu0 0
        %415 = vmatprep.subr.bf16.mxu0 0
        %416 = vmatpush1.bf16.msra.mxu0 0
        %417 = vmatprep.subr.bf16.mxu0 0
        %418 = vmatpush1.bf16.msra.mxu0 0
        %419 = vmatprep.subr.bf16.mxu0 0
        %420 = vmatpush1.bf16.msra.mxu0 0
        %421 = vmatprep.subr.bf16.mxu0 0
        %422 = vmatpush1.bf16.msra.mxu0 0
        %423 = vmatprep.mubr.bf16.mxu0 0
        %424 = vmatmul.mubr.bf16.gmra.mrb[0].mxu0 %v262
        %v425 = vpop.f32.mrb[0].mxu0
        %v426 = vadd.f32 0.0, %v425
        %v427 = vpop.f32.mrb[0].mxu0
        %v428 = vadd.f32 0.0, %v427
        %v429 = vpop.f32.mrb[0].mxu0
        %v430 = vadd.f32 0.0, %v429
        %v431 = vpop.f32.mrb[0].mxu0
        %v432 = vadd.f32 0.0, %v431
        %433 = vmatprep.mubr.bf16.mxu0 0
        %434 = vmatmul.mubr.bf16.gmra.mrb[0].mxu0 %v265
        %v435 = vpop.f32.mrb[0].mxu0
        %v436 = vadd.f32 0.0, %v435
        %v437 = vpop.f32.mrb[0].mxu0
        %v438 = vadd.f32 0.0, %v437
        %v439 = vpop.f32.mrb[0].mxu0
        %v440 = vpop.f32.mrb[0].mxu0
        %441 = vdwg.mxu0
        %442 = vmatprep.subr.bf16.mxu0 0
        %443 = vmatpush1.bf16.msra.mxu0 %v245
        %444 = vmatprep.subr.bf16.mxu0 0
        %445 = vmatpush1.bf16.msra.mxu0 %v287
        %446 = vmatprep.subr.bf16.mxu0 0
        %447 = vmatpush1.bf16.msra.mxu0 0
        %448 = vmatprep.subr.bf16.mxu0 0
        %449 = vmatpush1.bf16.msra.mxu0 0
        %450 = vmatprep.subr.bf16.mxu0 0
        %451 = vmatpush1.bf16.msra.mxu0 0
        %452 = vmatprep.subr.bf16.mxu0 0
        %453 = vmatpush1.bf16.msra.mxu0 0
        %454 = vmatprep.subr.bf16.mxu0 0
        %455 = vmatpush1.bf16.msra.mxu0 0
        %456 = vmatprep.subr.bf16.mxu0 0
        %457 = vmatpush1.bf16.msra.mxu0 0
        %458 = vmatprep.subr.bf16.mxu0 0
        %459 = vmatpush1.bf16.msra.mxu0 0
        %460 = vmatprep.subr.bf16.mxu0 0
        %461 = vmatpush1.bf16.msra.mxu0 0
        %462 = vmatprep.subr.bf16.mxu0 0
        %463 = vmatpush1.bf16.msra.mxu0 0
        %464 = vmatprep.subr.bf16.mxu0 0
        %465 = vmatpush1.bf16.msra.mxu0 0
        %466 = vmatprep.subr.bf16.mxu0 0
        %467 = vmatpush1.bf16.msra.mxu0 0
        %468 = vmatprep.subr.bf16.mxu0 0
        %469 = vmatpush1.bf16.msra.mxu0 0
        %470 = vmatprep.subr.bf16.mxu0 0
        %471 = vmatpush1.bf16.msra.mxu0 0
        %472 = vmatprep.subr.bf16.mxu0 0
        %473 = vmatpush1.bf16.msra.mxu0 0
        %474 = vmatprep.mubr.bf16.mxu0 0
        %475 = vmatmul.mubr.bf16.gmra.mrb[0].mxu0 %v262
        %v476 = vpop.f32.mrb[0].mxu0
        %v477 = vadd.f32 0.0, %v476
        %v478 = vpop.f32.mrb[0].mxu0
        %v479 = vpop.f32.mrb[0].mxu0
        %v480 = vadd.f32 0.0, %v479
        %v481 = vpop.f32.mrb[0].mxu0
        %482 = vmatprep.mubr.bf16.mxu0 0
        %483 = vmatmul.mubr.bf16.gmra.mrb[0].mxu0 %v265
        %v484 = vpop.f32.mrb[0].mxu0
        %v485 = vadd.f32 0.0, %v484
        %v486 = vpop.f32.mrb[0].mxu0
        %v487 = vpop.f32.mrb[0].mxu0
        %v488 = vpop.f32.mrb[0].mxu0
        %489 = vdwg.mxu0
        %490 = vst [vmem:[#allocation2] sm:$0xff] %v324
        %491 = vst [vmem:[#allocation2 + $0x8] sm:$0xff] %v326
        %492 = vst [vmem:[#allocation2 + $0x10] sm:$0xff] %v375
        %493 = vst [vmem:[#allocation2 + $0x18] sm:$0xff] %v377
        %494 = vst [vmem:[#allocation2 + $0x20] sm:$0xff] %v426
        %495 = vst [vmem:[#allocation2 + $0x28] sm:$0xff] %v428
        %496 = vst [vmem:[#allocation2 + $0x30] sm:$0xff] %v477
        %497 = vst [vmem:[#allocation2 + $0x38] sm:$0xff] %v328
        %498 = vst [vmem:[#allocation2 + $0x40] sm:$0xff] %v330
        %499 = vst [vmem:[#allocation2 + $0x48] sm:$0xff] %v379
        %500 = vst [vmem:[#allocation2 + $0x50] sm:$0xff] %v381
        %501 = vst [vmem:[#allocation2 + $0x58] sm:$0xff] %v430
        %502 = vst [vmem:[#allocation2 + $0x60] sm:$0xff] %v432
        %503 = vst [vmem:[#allocation2 + $0x68] sm:$0xff] %v480
        %504 = vst [vmem:[#allocation2 + $0x70] sm:$0x3] %v334
        %505 = vst [vmem:[#allocation2 + $0x78] sm:$0x3] %v336
        %506 = vst [vmem:[#allocation2 + $0x80] sm:$0x3] %v385
        %507 = vst [vmem:[#allocation2 + $0x88] sm:$0x3] %v387
        %508 = vst [vmem:[#allocation2 + $0x90] sm:$0x3] %v436
        %509 = vst [vmem:[#allocation2 + $0x98] sm:$0x3] %v438
        %510 = vst [vmem:[#allocation2 + $0xa0] sm:$0x3] %v485
        %v511 = vld [vmem:[%s176 + $0x1c] sm:$0xff]
        %v512 = vld [vmem:[%s176 + $0x24] sm:$0xff]
        %v513 = vld [vmem:[%s176 + $0x2c] sm:$0xff]
        %v514 = vld [vmem:[%s176 + $0x34] sm:$0xf]
        %v515 = vld [vmem:[%s176 + $0x8c] sm:$0xff]
        %v516 = vld [vmem:[%s176 + $0x94] sm:$0xff]
        %v517 = vld [vmem:[%s176 + $0x9c] sm:$0xff]
        %v518 = vld [vmem:[%s176 + $0xa4] sm:$0xf]
        %v519 = vld [vmem:[%s176 + $0xfc] sm:$0x33]
        %v520 = vld [vmem:[%s176 + $0x104] sm:$0x33]
        %v521 = vld [vmem:[%s176 + $0x10c] sm:$0x33]
        %v522 = vld [vmem:[%s176 + $0x114] sm:$0x3]
        %v535 = vunpack.c.l.b16 %v511
        %v536 = vunpack.c.h.b16 %v511
        %v537 = vunpack.c.l.b16 %v512
        %v538 = vunpack.c.h.b16 %v512
        %v539 = vunpack.c.l.b16 %v513
        %v540 = vunpack.c.h.b16 %v513
        %v541 = vunpack.c.l.b16 %v514
        %v542 = vunpack.c.l.b16 %v515
        %v543 = vunpack.c.h.b16 %v515
        %v544 = vunpack.c.l.b16 %v516
        %v545 = vunpack.c.h.b16 %v516
        %v546 = vunpack.c.l.b16 %v517
        %v547 = vunpack.c.h.b16 %v517
        %v548 = vunpack.c.l.b16 %v518
        %v549 = vunpack.c.l.b16 %v519
        %v550 = vunpack.c.h.b16 %v519
        %v551 = vunpack.c.l.b16 %v520
        %v552 = vunpack.c.h.b16 %v520
        %v553 = vunpack.c.l.b16 %v521
        %v554 = vunpack.c.h.b16 %v521
        %v555 = vunpack.c.l.b16 %v522
        %v556 = vpack.c.b16 %v542, %v535
        %v557 = vpack.c.b16 %v543, %v536
        %v558 = vpack.c.b16 %v544, %v537
        %v559 = vpack.c.b16 %v545, %v538
        %v560 = vpack.c.b16 %v546, %v539
        %v561 = vpack.c.b16 %v547, %v540
        %v562 = vpack.c.b16 %v548, %v541
        %v563 = vpack.c.b16 %v549, %v549
        %v564 = vpack.c.b16 %v550, %v550
        %v565 = vpack.c.b16 %v551, %v551
        %v566 = vpack.c.b16 %v552, %v552
        %v567 = vpack.c.b16 %v553, %v553
        %v568 = vpack.c.b16 %v554, %v554
        %v569 = vpack.c.b16 %v555, %v555
        %v578 = vsel %vm267, %v563, 0
        %v581 = vsel %vm267, %v564, 0
        %v584 = vsel %vm267, %v565, 0
        %v587 = vsel %vm267, %v566, 0
        %v590 = vsel %vm267, %v567, 0
        %v593 = vsel %vm267, %v568, 0
        %v596 = vsel %vm267, %v569, 0
        %598 = vmatprep.subr.bf16.mxu0 %v557
        %599 = vmatpush1.bf16.msra.mxu0 %v556
        %600 = vmatprep.subr.bf16.mxu0 %v581
        %601 = vmatpush1.bf16.msra.mxu0 %v578
        %602 = vmatprep.subr.bf16.mxu0 0
        %603 = vmatpush1.bf16.msra.mxu0 0
        %604 = vmatprep.subr.bf16.mxu0 0
        %605 = vmatpush1.bf16.msra.mxu0 0
        %606 = vmatprep.subr.bf16.mxu0 0
        %607 = vmatpush1.bf16.msra.mxu0 0
        %608 = vmatprep.subr.bf16.mxu0 0
        %609 = vmatpush1.bf16.msra.mxu0 0
        %610 = vmatprep.subr.bf16.mxu0 0
        %611 = vmatpush1.bf16.msra.mxu0 0
        %612 = vmatprep.subr.bf16.mxu0 0
        %613 = vmatpush1.bf16.msra.mxu0 0
        %614 = vmatprep.subr.bf16.mxu0 0
        %615 = vmatpush1.bf16.msra.mxu0 0
        %616 = vmatprep.subr.bf16.mxu0 0
        %617 = vmatpush1.bf16.msra.mxu0 0
        %618 = vmatprep.subr.bf16.mxu0 0
        %619 = vmatpush1.bf16.msra.mxu0 0
        %620 = vmatprep.subr.bf16.mxu0 0
        %621 = vmatpush1.bf16.msra.mxu0 0
        %622 = vmatprep.subr.bf16.mxu0 0
        %623 = vmatpush1.bf16.msra.mxu0 0
        %624 = vmatprep.subr.bf16.mxu0 0
        %625 = vmatpush1.bf16.msra.mxu0 0
        %626 = vmatprep.subr.bf16.mxu0 0
        %627 = vmatpush1.bf16.msra.mxu0 0
        %628 = vmatprep.subr.bf16.mxu0 0
        %629 = vmatpush1.bf16.msra.mxu0 0
        %630 = vmatprep.mubr.bf16.mxu0 0
        %631 = vmatmul.mubr.bf16.gmra.mrb[0].mxu0 %v262
        %v632 = vpop.f32.mrb[0].mxu0
        %v633 = vadd.f32 0.0, %v632
        %v634 = vpop.f32.mrb[0].mxu0
        %v635 = vadd.f32 0.0, %v634
        %v636 = vpop.f32.mrb[0].mxu0
        %v637 = vadd.f32 0.0, %v636
        %v638 = vpop.f32.mrb[0].mxu0
        %v639 = vadd.f32 0.0, %v638
        %640 = vmatprep.mubr.bf16.mxu0 0
        %641 = vmatmul.mubr.bf16.gmra.mrb[0].mxu0 %v265
        %v642 = vpop.f32.mrb[0].mxu0
        %v643 = vadd.f32 0.0, %v642
        %v644 = vpop.f32.mrb[0].mxu0
        %v645 = vadd.f32 0.0, %v644
        %v646 = vpop.f32.mrb[0].mxu0
        %v647 = vpop.f32.mrb[0].mxu0
        %648 = vdwg.mxu0
        %649 = vmatprep.subr.bf16.mxu0 %v559
        %650 = vmatpush1.bf16.msra.mxu0 %v558
        %651 = vmatprep.subr.bf16.mxu0 %v587
        %652 = vmatpush1.bf16.msra.mxu0 %v584
        %653 = vmatprep.subr.bf16.mxu0 0
        %654 = vmatpush1.bf16.msra.mxu0 0
        %655 = vmatprep.subr.bf16.mxu0 0
        %656 = vmatpush1.bf16.msra.mxu0 0
        %657 = vmatprep.subr.bf16.mxu0 0
        %658 = vmatpush1.bf16.msra.mxu0 0
        %659 = vmatprep.subr.bf16.mxu0 0
        %660 = vmatpush1.bf16.msra.mxu0 0
        %661 = vmatprep.subr.bf16.mxu0 0
        %662 = vmatpush1.bf16.msra.mxu0 0
        %663 = vmatprep.subr.bf16.mxu0 0
        %664 = vmatpush1.bf16.msra.mxu0 0
        %665 = vmatprep.subr.bf16.mxu0 0
        %666 = vmatpush1.bf16.msra.mxu0 0
        %667 = vmatprep.subr.bf16.mxu0 0
        %668 = vmatpush1.bf16.msra.mxu0 0
        %669 = vmatprep.subr.bf16.mxu0 0
        %670 = vmatpush1.bf16.msra.mxu0 0
        %671 = vmatprep.subr.bf16.mxu0 0
        %672 = vmatpush1.bf16.msra.mxu0 0
        %673 = vmatprep.subr.bf16.mxu0 0
        %674 = vmatpush1.bf16.msra.mxu0 0
        %675 = vmatprep.subr.bf16.mxu0 0
        %676 = vmatpush1.bf16.msra.mxu0 0
        %677 = vmatprep.subr.bf16.mxu0 0
        %678 = vmatpush1.bf16.msra.mxu0 0
        %679 = vmatprep.subr.bf16.mxu0 0
        %680 = vmatpush1.bf16.msra.mxu0 0
        %681 = vmatprep.mubr.bf16.mxu0 0
        %682 = vmatmul.mubr.bf16.gmra.mrb[0].mxu0 %v262
        %v683 = vpop.f32.mrb[0].mxu0
        %v684 = vadd.f32 0.0, %v683
        %v685 = vpop.f32.mrb[0].mxu0
        %v686 = vadd.f32 0.0, %v685
        %v687 = vpop.f32.mrb[0].mxu0
        %v688 = vadd.f32 0.0, %v687
        %v689 = vpop.f32.mrb[0].mxu0
        %v690 = vadd.f32 0.0, %v689
        %691 = vmatprep.mubr.bf16.mxu0 0
        %692 = vmatmul.mubr.bf16.gmra.mrb[0].mxu0 %v265
        %v693 = vpop.f32.mrb[0].mxu0
        %v694 = vadd.f32 0.0, %v693
        %v695 = vpop.f32.mrb[0].mxu0
        %v696 = vadd.f32 0.0, %v695
        %v697 = vpop.f32.mrb[0].mxu0
        %v698 = vpop.f32.mrb[0].mxu0
        %699 = vdwg.mxu0
        %700 = vmatprep.subr.bf16.mxu0 %v561
        %701 = vmatpush1.bf16.msra.mxu0 %v560
        %702 = vmatprep.subr.bf16.mxu0 %v593
        %703 = vmatpush1.bf16.msra.mxu0 %v590
        %704 = vmatprep.subr.bf16.mxu0 0
        %705 = vmatpush1.bf16.msra.mxu0 0
        %706 = vmatprep.subr.bf16.mxu0 0
        %707 = vmatpush1.bf16.msra.mxu0 0
        %708 = vmatprep.subr.bf16.mxu0 0
        %709 = vmatpush1.bf16.msra.mxu0 0
        %710 = vmatprep.subr.bf16.mxu0 0
        %711 = vmatpush1.bf16.msra.mxu0 0
        %712 = vmatprep.subr.bf16.mxu0 0
        %713 = vmatpush1.bf16.msra.mxu0 0
        %714 = vmatprep.subr.bf16.mxu0 0
        %715 = vmatpush1.bf16.msra.mxu0 0
        %716 = vmatprep.subr.bf16.mxu0 0
        %717 = vmatpush1.bf16.msra.mxu0 0
        %718 = vmatprep.subr.bf16.mxu0 0
        %719 = vmatpush1.bf16.msra.mxu0 0
        %720 = vmatprep.subr.bf16.mxu0 0
        %721 = vmatpush1.bf16.msra.mxu0 0
        %722 = vmatprep.subr.bf16.mxu0 0
        %723 = vmatpush1.bf16.msra.mxu0 0
        %724 = vmatprep.subr.bf16.mxu0 0
        %725 = vmatpush1.bf16.msra.mxu0 0
        %726 = vmatprep.subr.bf16.mxu0 0
        %727 = vmatpush1.bf16.msra.mxu0 0
        %728 = vmatprep.subr.bf16.mxu0 0
        %729 = vmatpush1.bf16.msra.mxu0 0
        %730 = vmatprep.subr.bf16.mxu0 0
        %731 = vmatpush1.bf16.msra.mxu0 0
        %732 = vmatprep.mubr.bf16.mxu0 0
        %733 = vmatmul.mubr.bf16.gmra.mrb[0].mxu0 %v262
        %v734 = vpop.f32.mrb[0].mxu0
        %v735 = vadd.f32 0.0, %v734
        %v736 = vpop.f32.mrb[0].mxu0
        %v737 = vadd.f32 0.0, %v736
        %v738 = vpop.f32.mrb[0].mxu0
        %v739 = vadd.f32 0.0, %v738
        %v740 = vpop.f32.mrb[0].mxu0
        %v741 = vadd.f32 0.0, %v740
        %742 = vmatprep.mubr.bf16.mxu0 0
        %743 = vmatmul.mubr.bf16.gmra.mrb[0].mxu0 %v265
        %v744 = vpop.f32.mrb[0].mxu0
        %v745 = vadd.f32 0.0, %v744
        %v746 = vpop.f32.mrb[0].mxu0
        %v747 = vadd.f32 0.0, %v746
        %v748 = vpop.f32.mrb[0].mxu0
        %v749 = vpop.f32.mrb[0].mxu0
        %750 = vdwg.mxu0
        %751 = vmatprep.subr.bf16.mxu0 0
        %752 = vmatpush1.bf16.msra.mxu0 %v562
        %753 = vmatprep.subr.bf16.mxu0 0
        %754 = vmatpush1.bf16.msra.mxu0 %v596
        %755 = vmatprep.subr.bf16.mxu0 0
        %756 = vmatpush1.bf16.msra.mxu0 0
        %757 = vmatprep.subr.bf16.mxu0 0
        %758 = vmatpush1.bf16.msra.mxu0 0
        %759 = vmatprep.subr.bf16.mxu0 0
        %760 = vmatpush1.bf16.msra.mxu0 0
        %761 = vmatprep.subr.bf16.mxu0 0
        %762 = vmatpush1.bf16.msra.mxu0 0
        %763 = vmatprep.subr.bf16.mxu0 0
        %764 = vmatpush1.bf16.msra.mxu0 0
        %765 = vmatprep.subr.bf16.mxu0 0
        %766 = vmatpush1.bf16.msra.mxu0 0
        %767 = vmatprep.subr.bf16.mxu0 0
        %768 = vmatpush1.bf16.msra.mxu0 0
        %769 = vmatprep.subr.bf16.mxu0 0
        %770 = vmatpush1.bf16.msra.mxu0 0
        %771 = vmatprep.subr.bf16.mxu0 0
        %772 = vmatpush1.bf16.msra.mxu0 0
        %773 = vmatprep.subr.bf16.mxu0 0
        %774 = vmatpush1.bf16.msra.mxu0 0
        %775 = vmatprep.subr.bf16.mxu0 0
        %776 = vmatpush1.bf16.msra.mxu0 0
        %777 = vmatprep.subr.bf16.mxu0 0
        %778 = vmatpush1.bf16.msra.mxu0 0
        %779 = vmatprep.subr.bf16.mxu0 0
        %780 = vmatpush1.bf16.msra.mxu0 0
        %781 = vmatprep.subr.bf16.mxu0 0
        %782 = vmatpush1.bf16.msra.mxu0 0
        %783 = vmatprep.mubr.bf16.mxu0 0
        %784 = vmatmul.mubr.bf16.gmra.mrb[0].mxu0 %v262
        %v785 = vpop.f32.mrb[0].mxu0
        %v786 = vadd.f32 0.0, %v785
        %v787 = vpop.f32.mrb[0].mxu0
        %v788 = vpop.f32.mrb[0].mxu0
        %v789 = vadd.f32 0.0, %v788
        %v790 = vpop.f32.mrb[0].mxu0
        %791 = vmatprep.mubr.bf16.mxu0 0
        %792 = vmatmul.mubr.bf16.gmra.mrb[0].mxu0 %v265
        %v793 = vpop.f32.mrb[0].mxu0
        %v794 = vadd.f32 0.0, %v793
        %v795 = vpop.f32.mrb[0].mxu0
        %v796 = vpop.f32.mrb[0].mxu0
        %v797 = vpop.f32.mrb[0].mxu0
        %798 = vdwg.mxu0
        %v799 = vld [vmem:[#allocation2] sm:$0xfe]
        %v800 = vld [vmem:[#allocation2 + $0x8] sm:$0xfe]
        %v801 = vld [vmem:[#allocation2 + $0x10] sm:$0xfe]
        %v802 = vld [vmem:[#allocation2 + $0x18] sm:$0xfe]
        %v803 = vld [vmem:[#allocation2 + $0x20] sm:$0xfe]
        %v804 = vld [vmem:[#allocation2 + $0x28] sm:$0xfe]
        %v805 = vld [vmem:[#allocation2 + $0x30] sm:$0xfe]
        %v806 = vld [vmem:[#allocation2 + $0x38] sm:$0xff]
        %v807 = vld [vmem:[#allocation2 + $0x40] sm:$0xff]
        %v808 = vld [vmem:[#allocation2 + $0x48] sm:$0xff]
        %v809 = vld [vmem:[#allocation2 + $0x50] sm:$0xff]
        %v810 = vld [vmem:[#allocation2 + $0x58] sm:$0xff]
        %v811 = vld [vmem:[#allocation2 + $0x60] sm:$0xff]
        %v812 = vld [vmem:[#allocation2 + $0x68] sm:$0xff]
        %v813 = vld [vmem:[#allocation2 + $0x70] sm:$0x3]
        %v814 = vld [vmem:[#allocation2 + $0x78] sm:$0x3]
        %v815 = vld [vmem:[#allocation2 + $0x80] sm:$0x3]
        %v816 = vld [vmem:[#allocation2 + $0x88] sm:$0x3]
        %v817 = vld [vmem:[#allocation2 + $0x90] sm:$0x3]
        %v818 = vld [vmem:[#allocation2 + $0x98] sm:$0x3]
        %v819 = vld [vmem:[#allocation2 + $0xa0] sm:$0x3]
        %vm841 = vcmask 1040384
        %v842 = vrot.slane %v633, 7
        %v843 = vrot.slane %v635, 7
        %v844 = vrot.slane %v684, 7
        %v845 = vrot.slane %v686, 7
        %v846 = vrot.slane %v735, 7
        %v847 = vrot.slane %v737, 7
        %v848 = vrot.slane %v786, 7
        %v849 = vrot.slane %v637, 7
        %v850 = vsel %vm841, %v842, %v849
        %v851 = vrot.slane %v639, 7
        %v852 = vsel %vm841, %v843, %v851
        %v853 = vrot.slane %v688, 7
        %v854 = vsel %vm841, %v844, %v853
        %v855 = vrot.slane %v690, 7
        %v856 = vsel %vm841, %v845, %v855
        %v857 = vrot.slane %v739, 7
        %v858 = vsel %vm841, %v846, %v857
        %v859 = vrot.slane %v741, 7
        %v860 = vsel %vm841, %v847, %v859
        %v861 = vrot.slane %v789, 7
        %v862 = vsel %vm841, %v848, %v861
        %v863 = vrot.slane %v643, 7
        %v864 = vsel %vm841, %v849, %v863
        %v865 = vrot.slane %v645, 7
        %v866 = vsel %vm841, %v851, %v865
        %v867 = vrot.slane %v694, 7
        %v868 = vsel %vm841, %v853, %v867
        %v869 = vrot.slane %v696, 7
        %v870 = vsel %vm841, %v855, %v869
        %v871 = vrot.slane %v745, 7
        %v872 = vsel %vm841, %v857, %v871
        %v873 = vrot.slane %v747, 7
        %v874 = vsel %vm841, %v859, %v873
        %v875 = vrot.slane %v794, 7
        %v876 = vsel %vm841, %v861, %v875
        %v898 = vadd.f32 %v799, %v842
        %v899 = vadd.f32 %v800, %v843
        %v900 = vadd.f32 %v801, %v844
        %v901 = vadd.f32 %v802, %v845
        %v902 = vadd.f32 %v803, %v846
        %v903 = vadd.f32 %v804, %v847
        %v904 = vadd.f32 %v805, %v848
        %v905 = vadd.f32 %v806, %v850
        %v906 = vadd.f32 %v807, %v852
        %v907 = vadd.f32 %v808, %v854
        %v908 = vadd.f32 %v809, %v856
        %v909 = vadd.f32 %v810, %v858
        %v910 = vadd.f32 %v811, %v860
        %v911 = vadd.f32 %v812, %v862
        %v912 = vadd.f32 %v813, %v864
        %v913 = vadd.f32 %v814, %v866
        %v914 = vadd.f32 %v815, %v868
        %v915 = vadd.f32 %v816, %v870
        %v916 = vadd.f32 %v817, %v872
        %v917 = vadd.f32 %v818, %v874
        %v918 = vadd.f32 %v819, %v876
        %919 = vst [vmem:[#allocation2] sm:$0xfe] %v898
        %920 = vst [vmem:[#allocation2 + $0x8] sm:$0xfe] %v899
        %921 = vst [vmem:[#allocation2 + $0x10] sm:$0xfe] %v900
        %922 = vst [vmem:[#allocation2 + $0x18] sm:$0xfe] %v901
        %923 = vst [vmem:[#allocation2 + $0x20] sm:$0xfe] %v902
        %924 = vst [vmem:[#allocation2 + $0x28] sm:$0xfe] %v903
        %925 = vst [vmem:[#allocation2 + $0x30] sm:$0xfe] %v904
        %926 = vst [vmem:[#allocation2 + $0x38] sm:$0xff] %v905
        %927 = vst [vmem:[#allocation2 + $0x40] sm:$0xff] %v906
        %928 = vst [vmem:[#allocation2 + $0x48] sm:$0xff] %v907
        %929 = vst [vmem:[#allocation2 + $0x50] sm:$0xff] %v908
        %930 = vst [vmem:[#allocation2 + $0x58] sm:$0xff] %v909
        %931 = vst [vmem:[#allocation2 + $0x60] sm:$0xff] %v910
        %932 = vst [vmem:[#allocation2 + $0x68] sm:$0xff] %v911
        %933 = vst [vmem:[#allocation2 + $0x70] sm:$0x3] %v912
        %934 = vst [vmem:[#allocation2 + $0x78] sm:$0x3] %v913
        %935 = vst [vmem:[#allocation2 + $0x80] sm:$0x3] %v914
        %936 = vst [vmem:[#allocation2 + $0x88] sm:$0x3] %v915
        %937 = vst [vmem:[#allocation2 + $0x90] sm:$0x3] %v916
        %938 = vst [vmem:[#allocation2 + $0x98] sm:$0x3] %v917
        %939 = vst [vmem:[#allocation2 + $0xa0] sm:$0x3] %v918
        %v940 = vld [vmem:[%s176 + $0x38] sm:$0xff]
        %v941 = vld [vmem:[%s176 + $0x40] sm:$0xff]
        %v942 = vld [vmem:[%s176 + $0x48] sm:$0xff]
        %v943 = vld [vmem:[%s176 + $0x50] sm:$0xf]
        %v944 = vld [vmem:[%s176 + $0xa8] sm:$0xff]
        %v945 = vld [vmem:[%s176 + $0xb0] sm:$0xff]
        %v946 = vld [vmem:[%s176 + $0xb8] sm:$0xff]
        %v947 = vld [vmem:[%s176 + $0xc0] sm:$0xf]
        %v948 = vld [vmem:[%s176 + $0x118] sm:$0x33]
        %v949 = vld [vmem:[%s176 + $0x120] sm:$0x33]
        %v950 = vld [vmem:[%s176 + $0x128] sm:$0x33]
        %v951 = vld [vmem:[%s176 + $0x130] sm:$0x3]
        %v964 = vunpack.c.l.b16 %v940
        %v965 = vunpack.c.h.b16 %v940
        %v966 = vunpack.c.l.b16 %v941
        %v967 = vunpack.c.h.b16 %v941
        %v968 = vunpack.c.l.b16 %v942
        %v969 = vunpack.c.h.b16 %v942
        %v970 = vunpack.c.l.b16 %v943
        %v971 = vunpack.c.l.b16 %v944
        %v972 = vunpack.c.h.b16 %v944
        %v973 = vunpack.c.l.b16 %v945
        %v974 = vunpack.c.h.b16 %v945
        %v975 = vunpack.c.l.b16 %v946
        %v976 = vunpack.c.h.b16 %v946
        %v977 = vunpack.c.l.b16 %v947
        %v978 = vunpack.c.l.b16 %v948
        %v979 = vunpack.c.h.b16 %v948
        %v980 = vunpack.c.l.b16 %v949
        %v981 = vunpack.c.h.b16 %v949
        %v982 = vunpack.c.l.b16 %v950
        %v983 = vunpack.c.h.b16 %v950
        %v984 = vunpack.c.l.b16 %v951
        %v985 = vpack.c.b16 %v971, %v964
        %v986 = vpack.c.b16 %v972, %v965
        %v987 = vpack.c.b16 %v973, %v966
        %v988 = vpack.c.b16 %v974, %v967
        %v989 = vpack.c.b16 %v975, %v968
        %v990 = vpack.c.b16 %v976, %v969
        %v991 = vpack.c.b16 %v977, %v970
        %v992 = vpack.c.b16 %v978, %v978
        %v993 = vpack.c.b16 %v979, %v979
        %v994 = vpack.c.b16 %v980, %v980
        %v995 = vpack.c.b16 %v981, %v981
        %v996 = vpack.c.b16 %v982, %v982
        %v997 = vpack.c.b16 %v983, %v983
        %v998 = vpack.c.b16 %v984, %v984
        %v1007 = vsel %vm267, %v992, 0
        %v1010 = vsel %vm267, %v993, 0
        %v1013 = vsel %vm267, %v994, 0
        %v1016 = vsel %vm267, %v995, 0
        %v1019 = vsel %vm267, %v996, 0
        %v1022 = vsel %vm267, %v997, 0
        %v1025 = vsel %vm267, %v998, 0
        %1027 = vmatprep.subr.bf16.mxu0 %v986
        %1028 = vmatpush1.bf16.msra.mxu0 %v985
        %1029 = vmatprep.subr.bf16.mxu0 %v1010
        %1030 = vmatpush1.bf16.msra.mxu0 %v1007
        %1031 = vmatprep.subr.bf16.mxu0 0
        %1032 = vmatpush1.bf16.msra.mxu0 0
        %1033 = vmatprep.subr.bf16.mxu0 0
        %1034 = vmatpush1.bf16.msra.mxu0 0
        %1035 = vmatprep.subr.bf16.mxu0 0
        %1036 = vmatpush1.bf16.msra.mxu0 0
        %1037 = vmatprep.subr.bf16.mxu0 0
        %1038 = vmatpush1.bf16.msra.mxu0 0
        %1039 = vmatprep.subr.bf16.mxu0 0
        %1040 = vmatpush1.bf16.msra.mxu0 0
        %1041 = vmatprep.subr.bf16.mxu0 0
        %1042 = vmatpush1.bf16.msra.mxu0 0
        %1043 = vmatprep.subr.bf16.mxu0 0
        %1044 = vmatpush1.bf16.msra.mxu0 0
        %1045 = vmatprep.subr.bf16.mxu0 0
        %1046 = vmatpush1.bf16.msra.mxu0 0
        %1047 = vmatprep.subr.bf16.mxu0 0
        %1048 = vmatpush1.bf16.msra.mxu0 0
        %1049 = vmatprep.subr.bf16.mxu0 0
        %1050 = vmatpush1.bf16.msra.mxu0 0
        %1051 = vmatprep.subr.bf16.mxu0 0
        %1052 = vmatpush1.bf16.msra.mxu0 0
        %1053 = vmatprep.subr.bf16.mxu0 0
        %1054 = vmatpush1.bf16.msra.mxu0 0
        %1055 = vmatprep.subr.bf16.mxu0 0
        %1056 = vmatpush1.bf16.msra.mxu0 0
        %1057 = vmatprep.subr.bf16.mxu0 0
        %1058 = vmatpush1.bf16.msra.mxu0 0
        %1059 = vmatprep.mubr.bf16.mxu0 0
        %1060 = vmatmul.mubr.bf16.gmra.mrb[0].mxu0 %v262
        %v1061 = vpop.f32.mrb[0].mxu0
        %v1062 = vadd.f32 0.0, %v1061
        %v1063 = vpop.f32.mrb[0].mxu0
        %v1064 = vadd.f32 0.0, %v1063
        %v1065 = vpop.f32.mrb[0].mxu0
        %v1066 = vadd.f32 0.0, %v1065
        %v1067 = vpop.f32.mrb[0].mxu0
        %v1068 = vadd.f32 0.0, %v1067
        %1069 = vmatprep.mubr.bf16.mxu0 0
        %1070 = vmatmul.mubr.bf16.gmra.mrb[0].mxu0 %v265
        %v1071 = vpop.f32.mrb[0].mxu0
        %v1072 = vpop.f32.mrb[0].mxu0
        %v1073 = vpop.f32.mrb[0].mxu0
        %v1074 = vpop.f32.mrb[0].mxu0
        %1075 = vdwg.mxu0
        %1076 = vmatprep.subr.bf16.mxu0 %v988
        %1077 = vmatpush1.bf16.msra.mxu0 %v987
        %1078 = vmatprep.subr.bf16.mxu0 %v1016
        %1079 = vmatpush1.bf16.msra.mxu0 %v1013
        %1080 = vmatprep.subr.bf16.mxu0 0
        %1081 = vmatpush1.bf16.msra.mxu0 0
        %1082 = vmatprep.subr.bf16.mxu0 0
        %1083 = vmatpush1.bf16.msra.mxu0 0
        %1084 = vmatprep.subr.bf16.mxu0 0
        %1085 = vmatpush1.bf16.msra.mxu0 0
        %1086 = vmatprep.subr.bf16.mxu0 0
        %1087 = vmatpush1.bf16.msra.mxu0 0
        %1088 = vmatprep.subr.bf16.mxu0 0
        %1089 = vmatpush1.bf16.msra.mxu0 0
        %1090 = vmatprep.subr.bf16.mxu0 0
        %1091 = vmatpush1.bf16.msra.mxu0 0
        %1092 = vmatprep.subr.bf16.mxu0 0
        %1093 = vmatpush1.bf16.msra.mxu0 0
        %1094 = vmatprep.subr.bf16.mxu0 0
        %1095 = vmatpush1.bf16.msra.mxu0 0
        %1096 = vmatprep.subr.bf16.mxu0 0
        %1097 = vmatpush1.bf16.msra.mxu0 0
        %1098 = vmatprep.subr.bf16.mxu0 0
        %1099 = vmatpush1.bf16.msra.mxu0 0
        %1100 = vmatprep.subr.bf16.mxu0 0
        %1101 = vmatpush1.bf16.msra.mxu0 0
        %1102 = vmatprep.subr.bf16.mxu0 0
        %1103 = vmatpush1.bf16.msra.mxu0 0
        %1104 = vmatprep.subr.bf16.mxu0 0
        %1105 = vmatpush1.bf16.msra.mxu0 0
        %1106 = vmatprep.subr.bf16.mxu0 0
        %1107 = vmatpush1.bf16.msra.mxu0 0
        %1108 = vmatprep.mubr.bf16.mxu0 0
        %1109 = vmatmul.mubr.bf16.gmra.mrb[0].mxu0 %v262
        %v1110 = vpop.f32.mrb[0].mxu0
        %v1111 = vadd.f32 0.0, %v1110
        %v1112 = vpop.f32.mrb[0].mxu0
        %v1113 = vadd.f32 0.0, %v1112
        %v1114 = vpop.f32.mrb[0].mxu0
        %v1115 = vadd.f32 0.0, %v1114
        %v1116 = vpop.f32.mrb[0].mxu0
        %v1117 = vadd.f32 0.0, %v1116
        %1118 = vmatprep.mubr.bf16.mxu0 0
        %1119 = vmatmul.mubr.bf16.gmra.mrb[0].mxu0 %v265
        %v1120 = vpop.f32.mrb[0].mxu0
        %v1121 = vpop.f32.mrb[0].mxu0
        %v1122 = vpop.f32.mrb[0].mxu0
        %v1123 = vpop.f32.mrb[0].mxu0
        %1124 = vdwg.mxu0
        %1125 = vmatprep.subr.bf16.mxu0 %v990
        %1126 = vmatpush1.bf16.msra.mxu0 %v989
        %1127 = vmatprep.subr.bf16.mxu0 %v1022
        %1128 = vmatpush1.bf16.msra.mxu0 %v1019
        %1129 = vmatprep.subr.bf16.mxu0 0
        %1130 = vmatpush1.bf16.msra.mxu0 0
        %1131 = vmatprep.subr.bf16.mxu0 0
        %1132 = vmatpush1.bf16.msra.mxu0 0
        %1133 = vmatprep.subr.bf16.mxu0 0
        %1134 = vmatpush1.bf16.msra.mxu0 0
        %1135 = vmatprep.subr.bf16.mxu0 0
        %1136 = vmatpush1.bf16.msra.mxu0 0
        %1137 = vmatprep.subr.bf16.mxu0 0
        %1138 = vmatpush1.bf16.msra.mxu0 0
        %1139 = vmatprep.subr.bf16.mxu0 0
        %1140 = vmatpush1.bf16.msra.mxu0 0
        %1141 = vmatprep.subr.bf16.mxu0 0
        %1142 = vmatpush1.bf16.msra.mxu0 0
        %1143 = vmatprep.subr.bf16.mxu0 0
        %1144 = vmatpush1.bf16.msra.mxu0 0
        %1145 = vmatprep.subr.bf16.mxu0 0
        %1146 = vmatpush1.bf16.msra.mxu0 0
        %1147 = vmatprep.subr.bf16.mxu0 0
        %1148 = vmatpush1.bf16.msra.mxu0 0
        %1149 = vmatprep.subr.bf16.mxu0 0
        %1150 = vmatpush1.bf16.msra.mxu0 0
        %1151 = vmatprep.subr.bf16.mxu0 0
        %1152 = vmatpush1.bf16.msra.mxu0 0
        %1153 = vmatprep.subr.bf16.mxu0 0
        %1154 = vmatpush1.bf16.msra.mxu0 0
        %1155 = vmatprep.subr.bf16.mxu0 0
        %1156 = vmatpush1.bf16.msra.mxu0 0
        %1157 = vmatprep.mubr.bf16.mxu0 0
        %1158 = vmatmul.mubr.bf16.gmra.mrb[0].mxu0 %v262
        %v1159 = vpop.f32.mrb[0].mxu0
        %v1160 = vadd.f32 0.0, %v1159
        %v1161 = vpop.f32.mrb[0].mxu0
        %v1162 = vadd.f32 0.0, %v1161
        %v1163 = vpop.f32.mrb[0].mxu0
        %v1164 = vadd.f32 0.0, %v1163
        %v1165 = vpop.f32.mrb[0].mxu0
        %v1166 = vadd.f32 0.0, %v1165
        %1167 = vmatprep.mubr.bf16.mxu0 0
        %1168 = vmatmul.mubr.bf16.gmra.mrb[0].mxu0 %v265
        %v1169 = vpop.f32.mrb[0].mxu0
        %v1170 = vpop.f32.mrb[0].mxu0
        %v1171 = vpop.f32.mrb[0].mxu0
        %v1172 = vpop.f32.mrb[0].mxu0
        %1173 = vdwg.mxu0
        %1174 = vmatprep.subr.bf16.mxu0 0
        %1175 = vmatpush1.bf16.msra.mxu0 %v991
        %1176 = vmatprep.subr.bf16.mxu0 0
        %1177 = vmatpush1.bf16.msra.mxu0 %v1025
        %1178 = vmatprep.subr.bf16.mxu0 0
        %1179 = vmatpush1.bf16.msra.mxu0 0
        %1180 = vmatprep.subr.bf16.mxu0 0
        %1181 = vmatpush1.bf16.msra.mxu0 0
        %1182 = vmatprep.subr.bf16.mxu0 0
        %1183 = vmatpush1.bf16.msra.mxu0 0
        %1184 = vmatprep.subr.bf16.mxu0 0
        %1185 = vmatpush1.bf16.msra.mxu0 0
        %1186 = vmatprep.subr.bf16.mxu0 0
        %1187 = vmatpush1.bf16.msra.mxu0 0
        %1188 = vmatprep.subr.bf16.mxu0 0
        %1189 = vmatpush1.bf16.msra.mxu0 0
        %1190 = vmatprep.subr.bf16.mxu0 0
        %1191 = vmatpush1.bf16.msra.mxu0 0
        %1192 = vmatprep.subr.bf16.mxu0 0
        %1193 = vmatpush1.bf16.msra.mxu0 0
        %1194 = vmatprep.subr.bf16.mxu0 0
        %1195 = vmatpush1.bf16.msra.mxu0 0
        %1196 = vmatprep.subr.bf16.mxu0 0
        %1197 = vmatpush1.bf16.msra.mxu0 0
        %1198 = vmatprep.subr.bf16.mxu0 0
        %1199 = vmatpush1.bf16.msra.mxu0 0
        %1200 = vmatprep.subr.bf16.mxu0 0
        %1201 = vmatpush1.bf16.msra.mxu0 0
        %1202 = vmatprep.subr.bf16.mxu0 0
        %1203 = vmatpush1.bf16.msra.mxu0 0
        %1204 = vmatprep.subr.bf16.mxu0 0
        %1205 = vmatpush1.bf16.msra.mxu0 0
        %1206 = vmatprep.mubr.bf16.mxu0 0
        %1207 = vmatmul.mubr.bf16.gmra.mrb[0].mxu0 %v262
        %v1208 = vpop.f32.mrb[0].mxu0
        %v1209 = vadd.f32 0.0, %v1208
        %v1210 = vpop.f32.mrb[0].mxu0
        %v1211 = vpop.f32.mrb[0].mxu0
        %v1212 = vadd.f32 0.0, %v1211
        %v1213 = vpop.f32.mrb[0].mxu0
        %1214 = vmatprep.mubr.bf16.mxu0 0
        %1215 = vmatmul.mubr.bf16.gmra.mrb[0].mxu0 %v265
        %v1216 = vpop.f32.mrb[0].mxu0
        %v1217 = vpop.f32.mrb[0].mxu0
        %v1218 = vpop.f32.mrb[0].mxu0
        %v1219 = vpop.f32.mrb[0].mxu0
        %1220 = vdwg.mxu0
        %v1221 = vld [vmem:[#allocation2] sm:$0xfc]
        %v1222 = vld [vmem:[#allocation2 + $0x8] sm:$0xfc]
        %v1223 = vld [vmem:[#allocation2 + $0x10] sm:$0xfc]
        %v1224 = vld [vmem:[#allocation2 + $0x18] sm:$0xfc]
        %v1225 = vld [vmem:[#allocation2 + $0x20] sm:$0xfc]
        %v1226 = vld [vmem:[#allocation2 + $0x28] sm:$0xfc]
        %v1227 = vld [vmem:[#allocation2 + $0x30] sm:$0xfc]
        %v1228 = vld [vmem:[#allocation2 + $0x38] sm:$0xff]
        %v1229 = vld [vmem:[#allocation2 + $0x40] sm:$0xff]
        %v1230 = vld [vmem:[#allocation2 + $0x48] sm:$0xff]
        %v1231 = vld [vmem:[#allocation2 + $0x50] sm:$0xff]
        %v1232 = vld [vmem:[#allocation2 + $0x58] sm:$0xff]
        %v1233 = vld [vmem:[#allocation2 + $0x60] sm:$0xff]
        %v1234 = vld [vmem:[#allocation2 + $0x68] sm:$0xff]
        %v1235 = vld [vmem:[#allocation2 + $0x70] sm:$0x3]
        %v1236 = vld [vmem:[#allocation2 + $0x78] sm:$0x3]
        %v1237 = vld [vmem:[#allocation2 + $0x80] sm:$0x3]
        %v1238 = vld [vmem:[#allocation2 + $0x88] sm:$0x3]
        %v1239 = vld [vmem:[#allocation2 + $0x90] sm:$0x3]
        %v1240 = vld [vmem:[#allocation2 + $0x98] sm:$0x3]
        %v1241 = vld [vmem:[#allocation2 + $0xa0] sm:$0x3]
        %v1256 = vrot.slane %v1062, 6
        %v1257 = vrot.slane %v1064, 6
        %v1258 = vrot.slane %v1111, 6
        %v1259 = vrot.slane %v1113, 6
        %v1260 = vrot.slane %v1160, 6
        %v1261 = vrot.slane %v1162, 6
        %v1262 = vrot.slane %v1209, 6
        %v1263 = vrot.slane %v1066, 6
        %v1264 = vsel %vm267, %v1256, %v1263
        %v1265 = vrot.slane %v1068, 6
        %v1266 = vsel %vm267, %v1257, %v1265
        %v1267 = vrot.slane %v1115, 6
        %v1268 = vsel %vm267, %v1258, %v1267
        %v1269 = vrot.slane %v1117, 6
        %v1270 = vsel %vm267, %v1259, %v1269
        %v1271 = vrot.slane %v1164, 6
        %v1272 = vsel %vm267, %v1260, %v1271
        %v1273 = vrot.slane %v1166, 6
        %v1274 = vsel %vm267, %v1261, %v1273
        %v1275 = vrot.slane %v1212, 6
        %v1276 = vsel %vm267, %v1262, %v1275
        %v1298 = vadd.f32 %v1221, %v1256
        %v1299 = vadd.f32 %v1222, %v1257
        %v1300 = vadd.f32 %v1223, %v1258
        %v1301 = vadd.f32 %v1224, %v1259
        %v1302 = vadd.f32 %v1225, %v1260
        %v1303 = vadd.f32 %v1226, %v1261
        %v1304 = vadd.f32 %v1227, %v1262
        %v1305 = vadd.f32 %v1228, %v1264
        %v1306 = vadd.f32 %v1229, %v1266
        %v1307 = vadd.f32 %v1230, %v1268
        %v1308 = vadd.f32 %v1231, %v1270
        %v1309 = vadd.f32 %v1232, %v1272
        %v1310 = vadd.f32 %v1233, %v1274
        %v1311 = vadd.f32 %v1234, %v1276
        %v1312 = vadd.f32 %v1235, %v1263
        %v1313 = vadd.f32 %v1236, %v1265
        %v1314 = vadd.f32 %v1237, %v1267
        %v1315 = vadd.f32 %v1238, %v1269
        %v1316 = vadd.f32 %v1239, %v1271
        %v1317 = vadd.f32 %v1240, %v1273
        %v1318 = vadd.f32 %v1241, %v1275
        %1319 = vst [vmem:[#allocation2] sm:$0xfc] %v1298
        %1320 = vst [vmem:[#allocation2 + $0x8] sm:$0xfc] %v1299
        %1321 = vst [vmem:[#allocation2 + $0x10] sm:$0xfc] %v1300
        %1322 = vst [vmem:[#allocation2 + $0x18] sm:$0xfc] %v1301
        %1323 = vst [vmem:[#allocation2 + $0x20] sm:$0xfc] %v1302
        %1324 = vst [vmem:[#allocation2 + $0x28] sm:$0xfc] %v1303
        %1325 = vst [vmem:[#allocation2 + $0x30] sm:$0xfc] %v1304
        %1326 = vst [vmem:[#allocation2 + $0x38] sm:$0xff] %v1305
        %1327 = vst [vmem:[#allocation2 + $0x40] sm:$0xff] %v1306
        %1328 = vst [vmem:[#allocation2 + $0x48] sm:$0xff] %v1307
        %1329 = vst [vmem:[#allocation2 + $0x50] sm:$0xff] %v1308
        %1330 = vst [vmem:[#allocation2 + $0x58] sm:$0xff] %v1309
        %1331 = vst [vmem:[#allocation2 + $0x60] sm:$0xff] %v1310
        %1332 = vst [vmem:[#allocation2 + $0x68] sm:$0xff] %v1311
        %1333 = vst [vmem:[#allocation2 + $0x70] sm:$0x3] %v1312
        %1334 = vst [vmem:[#allocation2 + $0x78] sm:$0x3] %v1313
        %1335 = vst [vmem:[#allocation2 + $0x80] sm:$0x3] %v1314
        %1336 = vst [vmem:[#allocation2 + $0x88] sm:$0x3] %v1315
        %1337 = vst [vmem:[#allocation2 + $0x90] sm:$0x3] %v1316
        %1338 = vst [vmem:[#allocation2 + $0x98] sm:$0x3] %v1317
        %1339 = vst [vmem:[#allocation2 + $0xa0] sm:$0x3] %v1318
        %v1340 = vld [vmem:[%s176 + $0x54] sm:$0xff]
        %v1341 = vld [vmem:[%s176 + $0x5c] sm:$0xff]
        %v1342 = vld [vmem:[%s176 + $0x64] sm:$0xff]
        %v1343 = vld [vmem:[%s176 + $0x6c] sm:$0xf]
        %v1344 = vld [vmem:[%s176 + $0xc4] sm:$0xff]
        %v1345 = vld [vmem:[%s176 + $0xcc] sm:$0xff]
        %v1346 = vld [vmem:[%s176 + $0xd4] sm:$0xff]
        %v1347 = vld [vmem:[%s176 + $0xdc] sm:$0xf]
        %v1348 = vld [vmem:[%s176 + $0x134] sm:$0x33]
        %v1349 = vld [vmem:[%s176 + $0x13c] sm:$0x33]
        %v1350 = vld [vmem:[%s176 + $0x144] sm:$0x33]
        %v1351 = vld [vmem:[%s176 + $0x14c] sm:$0x3]
        %v1364 = vunpack.c.l.b16 %v1340
        %v1365 = vunpack.c.h.b16 %v1340
        %v1366 = vunpack.c.l.b16 %v1341
        %v1367 = vunpack.c.h.b16 %v1341
        %v1368 = vunpack.c.l.b16 %v1342
        %v1369 = vunpack.c.h.b16 %v1342
        %v1370 = vunpack.c.l.b16 %v1343
        %v1371 = vunpack.c.l.b16 %v1344
        %v1372 = vunpack.c.h.b16 %v1344
        %v1373 = vunpack.c.l.b16 %v1345
        %v1374 = vunpack.c.h.b16 %v1345
        %v1375 = vunpack.c.l.b16 %v1346
        %v1376 = vunpack.c.h.b16 %v1346
        %v1377 = vunpack.c.l.b16 %v1347
        %v1378 = vunpack.c.l.b16 %v1348
        %v1379 = vunpack.c.h.b16 %v1348
        %v1380 = vunpack.c.l.b16 %v1349
        %v1381 = vunpack.c.h.b16 %v1349
        %v1382 = vunpack.c.l.b16 %v1350
        %v1383 = vunpack.c.h.b16 %v1350
        %v1384 = vunpack.c.l.b16 %v1351
        %v1385 = vpack.c.b16 %v1371, %v1364
        %v1386 = vpack.c.b16 %v1372, %v1365
        %v1387 = vpack.c.b16 %v1373, %v1366
        %v1388 = vpack.c.b16 %v1374, %v1367
        %v1389 = vpack.c.b16 %v1375, %v1368
        %v1390 = vpack.c.b16 %v1376, %v1369
        %v1391 = vpack.c.b16 %v1377, %v1370
        %v1392 = vpack.c.b16 %v1378, %v1378
        %v1393 = vpack.c.b16 %v1379, %v1379
        %v1394 = vpack.c.b16 %v1380, %v1380
        %v1395 = vpack.c.b16 %v1381, %v1381
        %v1396 = vpack.c.b16 %v1382, %v1382
        %v1397 = vpack.c.b16 %v1383, %v1383
        %v1398 = vpack.c.b16 %v1384, %v1384
        %v1407 = vsel %vm267, %v1392, 0
        %v1410 = vsel %vm267, %v1393, 0
        %v1413 = vsel %vm267, %v1394, 0
        %v1416 = vsel %vm267, %v1395, 0
        %v1419 = vsel %vm267, %v1396, 0
        %v1422 = vsel %vm267, %v1397, 0
        %v1425 = vsel %vm267, %v1398, 0
        %1427 = vmatprep.subr.bf16.mxu0 %v1386
        %1428 = vmatpush1.bf16.msra.mxu0 %v1385
        %1429 = vmatprep.subr.bf16.mxu0 %v1410
        %1430 = vmatpush1.bf16.msra.mxu0 %v1407
        %1431 = vmatprep.subr.bf16.mxu0 0
        %1432 = vmatpush1.bf16.msra.mxu0 0
        %1433 = vmatprep.subr.bf16.mxu0 0
        %1434 = vmatpush1.bf16.msra.mxu0 0
        %1435 = vmatprep.subr.bf16.mxu0 0
        %1436 = vmatpush1.bf16.msra.mxu0 0
        %1437 = vmatprep.subr.bf16.mxu0 0
        %1438 = vmatpush1.bf16.msra.mxu0 0
        %1439 = vmatprep.subr.bf16.mxu0 0
        %1440 = vmatpush1.bf16.msra.mxu0 0
        %1441 = vmatprep.subr.bf16.mxu0 0
        %1442 = vmatpush1.bf16.msra.mxu0 0
        %1443 = vmatprep.subr.bf16.mxu0 0
        %1444 = vmatpush1.bf16.msra.mxu0 0
        %1445 = vmatprep.subr.bf16.mxu0 0
        %1446 = vmatpush1.bf16.msra.mxu0 0
        %1447 = vmatprep.subr.bf16.mxu0 0
        %1448 = vmatpush1.bf16.msra.mxu0 0
        %1449 = vmatprep.subr.bf16.mxu0 0
        %1450 = vmatpush1.bf16.msra.mxu0 0
        %1451 = vmatprep.subr.bf16.mxu0 0
        %1452 = vmatpush1.bf16.msra.mxu0 0
        %1453 = vmatprep.subr.bf16.mxu0 0
        %1454 = vmatpush1.bf16.msra.mxu0 0
        %1455 = vmatprep.subr.bf16.mxu0 0
        %1456 = vmatpush1.bf16.msra.mxu0 0
        %1457 = vmatprep.subr.bf16.mxu0 0
        %1458 = vmatpush1.bf16.msra.mxu0 0
        %1459 = vmatprep.mubr.bf16.mxu0 0
        %1460 = vmatmul.mubr.bf16.gmra.mrb[0].mxu0 %v262
        %v1461 = vpop.f32.mrb[0].mxu0
        %v1462 = vadd.f32 0.0, %v1461
        %v1463 = vpop.f32.mrb[0].mxu0
        %v1464 = vadd.f32 0.0, %v1463
        %v1465 = vpop.f32.mrb[0].mxu0
        %v1466 = vadd.f32 0.0, %v1465
        %v1467 = vpop.f32.mrb[0].mxu0
        %v1468 = vadd.f32 0.0, %v1467
        %1469 = vmatprep.mubr.bf16.mxu0 0
        %1470 = vmatmul.mubr.bf16.gmra.mrb[0].mxu0 %v265
        %v1471 = vpop.f32.mrb[0].mxu0
        %v1472 = vpop.f32.mrb[0].mxu0
        %v1473 = vpop.f32.mrb[0].mxu0
        %v1474 = vpop.f32.mrb[0].mxu0
        %1475 = vdwg.mxu0
        %1476 = vmatprep.subr.bf16.mxu0 %v1388
        %1477 = vmatpush1.bf16.msra.mxu0 %v1387
        %1478 = vmatprep.subr.bf16.mxu0 %v1416
        %1479 = vmatpush1.bf16.msra.mxu0 %v1413
        %1480 = vmatprep.subr.bf16.mxu0 0
        %1481 = vmatpush1.bf16.msra.mxu0 0
        %1482 = vmatprep.subr.bf16.mxu0 0
        %1483 = vmatpush1.bf16.msra.mxu0 0
        %1484 = vmatprep.subr.bf16.mxu0 0
        %1485 = vmatpush1.bf16.msra.mxu0 0
        %1486 = vmatprep.subr.bf16.mxu0 0
        %1487 = vmatpush1.bf16.msra.mxu0 0
        %1488 = vmatprep.subr.bf16.mxu0 0
        %1489 = vmatpush1.bf16.msra.mxu0 0
        %1490 = vmatprep.subr.bf16.mxu0 0
        %1491 = vmatpush1.bf16.msra.mxu0 0
        %1492 = vmatprep.subr.bf16.mxu0 0
        %1493 = vmatpush1.bf16.msra.mxu0 0
        %1494 = vmatprep.subr.bf16.mxu0 0
        %1495 = vmatpush1.bf16.msra.mxu0 0
        %1496 = vmatprep.subr.bf16.mxu0 0
        %1497 = vmatpush1.bf16.msra.mxu0 0
        %1498 = vmatprep.subr.bf16.mxu0 0
        %1499 = vmatpush1.bf16.msra.mxu0 0
        %1500 = vmatprep.subr.bf16.mxu0 0
        %1501 = vmatpush1.bf16.msra.mxu0 0
        %1502 = vmatprep.subr.bf16.mxu0 0
        %1503 = vmatpush1.bf16.msra.mxu0 0
        %1504 = vmatprep.subr.bf16.mxu0 0
        %1505 = vmatpush1.bf16.msra.mxu0 0
        %1506 = vmatprep.subr.bf16.mxu0 0
        %1507 = vmatpush1.bf16.msra.mxu0 0
        %1508 = vmatprep.mubr.bf16.mxu0 0
        %1509 = vmatmul.mubr.bf16.gmra.mrb[0].mxu0 %v262
        %v1510 = vpop.f32.mrb[0].mxu0
        %v1511 = vadd.f32 0.0, %v1510
        %v1512 = vpop.f32.mrb[0].mxu0
        %v1513 = vadd.f32 0.0, %v1512
        %v1514 = vpop.f32.mrb[0].mxu0
        %v1515 = vadd.f32 0.0, %v1514
        %v1516 = vpop.f32.mrb[0].mxu0
        %v1517 = vadd.f32 0.0, %v1516
        %1518 = vmatprep.mubr.bf16.mxu0 0
        %1519 = vmatmul.mubr.bf16.gmra.mrb[0].mxu0 %v265
        %v1520 = vpop.f32.mrb[0].mxu0
        %v1521 = vpop.f32.mrb[0].mxu0
        %v1522 = vpop.f32.mrb[0].mxu0
        %v1523 = vpop.f32.mrb[0].mxu0
        %1524 = vdwg.mxu0
        %1525 = vmatprep.subr.bf16.mxu0 %v1390
        %1526 = vmatpush1.bf16.msra.mxu0 %v1389
        %1527 = vmatprep.subr.bf16.mxu0 %v1422
        %1528 = vmatpush1.bf16.msra.mxu0 %v1419
        %1529 = vmatprep.subr.bf16.mxu0 0
        %1530 = vmatpush1.bf16.msra.mxu0 0
        %1531 = vmatprep.subr.bf16.mxu0 0
        %1532 = vmatpush1.bf16.msra.mxu0 0
        %1533 = vmatprep.subr.bf16.mxu0 0
        %1534 = vmatpush1.bf16.msra.mxu0 0
        %1535 = vmatprep.subr.bf16.mxu0 0
        %1536 = vmatpush1.bf16.msra.mxu0 0
        %1537 = vmatprep.subr.bf16.mxu0 0
        %1538 = vmatpush1.bf16.msra.mxu0 0
        %1539 = vmatprep.subr.bf16.mxu0 0
        %1540 = vmatpush1.bf16.msra.mxu0 0
        %1541 = vmatprep.subr.bf16.mxu0 0
        %1542 = vmatpush1.bf16.msra.mxu0 0
        %1543 = vmatprep.subr.bf16.mxu0 0
        %1544 = vmatpush1.bf16.msra.mxu0 0
        %1545 = vmatprep.subr.bf16.mxu0 0
        %1546 = vmatpush1.bf16.msra.mxu0 0
        %1547 = vmatprep.subr.bf16.mxu0 0
        %1548 = vmatpush1.bf16.msra.mxu0 0
        %1549 = vmatprep.subr.bf16.mxu0 0
        %1550 = vmatpush1.bf16.msra.mxu0 0
        %1551 = vmatprep.subr.bf16.mxu0 0
        %1552 = vmatpush1.bf16.msra.mxu0 0
        %1553 = vmatprep.subr.bf16.mxu0 0
        %1554 = vmatpush1.bf16.msra.mxu0 0
        %1555 = vmatprep.subr.bf16.mxu0 0
        %1556 = vmatpush1.bf16.msra.mxu0 0
        %1557 = vmatprep.mubr.bf16.mxu0 0
        %1558 = vmatmul.mubr.bf16.gmra.mrb[0].mxu0 %v262
        %v1559 = vpop.f32.mrb[0].mxu0
        %v1560 = vadd.f32 0.0, %v1559
        %v1561 = vpop.f32.mrb[0].mxu0
        %v1562 = vadd.f32 0.0, %v1561
        %v1563 = vpop.f32.mrb[0].mxu0
        %v1564 = vadd.f32 0.0, %v1563
        %v1565 = vpop.f32.mrb[0].mxu0
        %v1566 = vadd.f32 0.0, %v1565
        %1567 = vmatprep.mubr.bf16.mxu0 0
        %1568 = vmatmul.mubr.bf16.gmra.mrb[0].mxu0 %v265
        %v1569 = vpop.f32.mrb[0].mxu0
        %v1570 = vpop.f32.mrb[0].mxu0
        %v1571 = vpop.f32.mrb[0].mxu0
        %v1572 = vpop.f32.mrb[0].mxu0
        %1573 = vdwg.mxu0
        %1574 = vmatprep.subr.bf16.mxu0 0
        %1575 = vmatpush1.bf16.msra.mxu0 %v1391
        %1576 = vmatprep.subr.bf16.mxu0 0
        %1577 = vmatpush1.bf16.msra.mxu0 %v1425
        %1578 = vmatprep.subr.bf16.mxu0 0
        %1579 = vmatpush1.bf16.msra.mxu0 0
        %1580 = vmatprep.subr.bf16.mxu0 0
        %1581 = vmatpush1.bf16.msra.mxu0 0
        %1582 = vmatprep.subr.bf16.mxu0 0
        %1583 = vmatpush1.bf16.msra.mxu0 0
        %1584 = vmatprep.subr.bf16.mxu0 0
        %1585 = vmatpush1.bf16.msra.mxu0 0
        %1586 = vmatprep.subr.bf16.mxu0 0
        %1587 = vmatpush1.bf16.msra.mxu0 0
        %1588 = vmatprep.subr.bf16.mxu0 0
        %1589 = vmatpush1.bf16.msra.mxu0 0
        %1590 = vmatprep.subr.bf16.mxu0 0
        %1591 = vmatpush1.bf16.msra.mxu0 0
        %1592 = vmatprep.subr.bf16.mxu0 0
        %1593 = vmatpush1.bf16.msra.mxu0 0
        %1594 = vmatprep.subr.bf16.mxu0 0
        %1595 = vmatpush1.bf16.msra.mxu0 0
        %1596 = vmatprep.subr.bf16.mxu0 0
        %1597 = vmatpush1.bf16.msra.mxu0 0
        %1598 = vmatprep.subr.bf16.mxu0 0
        %1599 = vmatpush1.bf16.msra.mxu0 0
        %1600 = vmatprep.subr.bf16.mxu0 0
        %1601 = vmatpush1.bf16.msra.mxu0 0
        %1602 = vmatprep.subr.bf16.mxu0 0
        %1603 = vmatpush1.bf16.msra.mxu0 0
        %1604 = vmatprep.subr.bf16.mxu0 0
        %1605 = vmatpush1.bf16.msra.mxu0 0
        %1606 = vmatprep.mubr.bf16.mxu0 0
        %1607 = vmatmul.mubr.bf16.gmra.mrb[0].mxu0 %v262
        %v1608 = vpop.f32.mrb[0].mxu0
        %v1609 = vadd.f32 0.0, %v1608
        %v1610 = vpop.f32.mrb[0].mxu0
        %v1611 = vpop.f32.mrb[0].mxu0
        %v1612 = vadd.f32 0.0, %v1611
        %v1613 = vpop.f32.mrb[0].mxu0
        %1614 = vmatprep.mubr.bf16.mxu0 0
        %1615 = vmatmul.mubr.bf16.gmra.mrb[0].mxu0 %v265
        %v1616 = vpop.f32.mrb[0].mxu0
        %v1617 = vpop.f32.mrb[0].mxu0
        %v1618 = vpop.f32.mrb[0].mxu0
        %v1619 = vpop.f32.mrb[0].mxu0
        %1620 = vdwg.mxu0
        %v1621 = vld [vmem:[#allocation2] sm:$0xf8]
        %v1622 = vld [vmem:[#allocation2 + $0x8] sm:$0xf8]
        %v1623 = vld [vmem:[#allocation2 + $0x10] sm:$0xf8]
        %v1624 = vld [vmem:[#allocation2 + $0x18] sm:$0xf8]
        %v1625 = vld [vmem:[#allocation2 + $0x20] sm:$0xf8]
        %v1626 = vld [vmem:[#allocation2 + $0x28] sm:$0xf8]
        %v1627 = vld [vmem:[#allocation2 + $0x30] sm:$0xf8]
        %v1628 = vld [vmem:[#allocation2 + $0x38] sm:$0xff]
        %v1629 = vld [vmem:[#allocation2 + $0x40] sm:$0xff]
        %v1630 = vld [vmem:[#allocation2 + $0x48] sm:$0xff]
        %v1631 = vld [vmem:[#allocation2 + $0x50] sm:$0xff]
        %v1632 = vld [vmem:[#allocation2 + $0x58] sm:$0xff]
        %v1633 = vld [vmem:[#allocation2 + $0x60] sm:$0xff]
        %v1634 = vld [vmem:[#allocation2 + $0x68] sm:$0xff]
        %v1635 = vld [vmem:[#allocation2 + $0x70] sm:$0x3]
        %v1636 = vld [vmem:[#allocation2 + $0x78] sm:$0x3]
        %v1637 = vld [vmem:[#allocation2 + $0x80] sm:$0x3]
        %v1638 = vld [vmem:[#allocation2 + $0x88] sm:$0x3]
        %v1639 = vld [vmem:[#allocation2 + $0x90] sm:$0x3]
        %v1640 = vld [vmem:[#allocation2 + $0x98] sm:$0x3]
        %v1641 = vld [vmem:[#allocation2 + $0xa0] sm:$0x3]
        %vm1656 = vcmask 1042432
        %v1657 = vrot.slane %v1462, 5
        %v1658 = vrot.slane %v1464, 5
        %v1659 = vrot.slane %v1511, 5
        %v1660 = vrot.slane %v1513, 5
        %v1661 = vrot.slane %v1560, 5
        %v1662 = vrot.slane %v1562, 5
        %v1663 = vrot.slane %v1609, 5
        %v1664 = vrot.slane %v1466, 5
        %v1665 = vsel %vm1656, %v1657, %v1664
        %v1666 = vrot.slane %v1468, 5
        %v1667 = vsel %vm1656, %v1658, %v1666
        %v1668 = vrot.slane %v1515, 5
        %v1669 = vsel %vm1656, %v1659, %v1668
        %v1670 = vrot.slane %v1517, 5
        %v1671 = vsel %vm1656, %v1660, %v1670
        %v1672 = vrot.slane %v1564, 5
        %v1673 = vsel %vm1656, %v1661, %v1672
        %v1674 = vrot.slane %v1566, 5
        %v1675 = vsel %vm1656, %v1662, %v1674
        %v1676 = vrot.slane %v1612, 5
        %v1677 = vsel %vm1656, %v1663, %v1676
        %v1699 = vadd.f32 %v1621, %v1657
        %v1700 = vadd.f32 %v1622, %v1658
        %v1701 = vadd.f32 %v1623, %v1659
        %v1702 = vadd.f32 %v1624, %v1660
        %v1703 = vadd.f32 %v1625, %v1661
        %v1704 = vadd.f32 %v1626, %v1662
        %v1705 = vadd.f32 %v1627, %v1663
        %v1706 = vadd.f32 %v1628, %v1665
        %v1707 = vadd.f32 %v1629, %v1667
        %v1708 = vadd.f32 %v1630, %v1669
        %v1709 = vadd.f32 %v1631, %v1671
        %v1710 = vadd.f32 %v1632, %v1673
        %v1711 = vadd.f32 %v1633, %v1675
        %v1712 = vadd.f32 %v1634, %v1677
        %v1713 = vadd.f32 %v1635, %v1664
        %v1714 = vadd.f32 %v1636, %v1666
        %v1715 = vadd.f32 %v1637, %v1668
        %v1716 = vadd.f32 %v1638, %v1670
        %v1717 = vadd.f32 %v1639, %v1672
        %v1718 = vadd.f32 %v1640, %v1674
        %v1719 = vadd.f32 %v1641, %v1676
        %1720 = vst [vmem:[#allocation2] sm:$0xf8] %v1699
        %1721 = vst [vmem:[#allocation2 + $0x8] sm:$0xf8] %v1700
        %1722 = vst [vmem:[#allocation2 + $0x10] sm:$0xf8] %v1701
        %1723 = vst [vmem:[#allocation2 + $0x18] sm:$0xf8] %v1702
        %1724 = vst [vmem:[#allocation2 + $0x20] sm:$0xf8] %v1703
        %1725 = vst [vmem:[#allocation2 + $0x28] sm:$0xf8] %v1704
        %1726 = vst [vmem:[#allocation2 + $0x30] sm:$0xf8] %v1705
        %1727 = vst [vmem:[#allocation2 + $0x38] sm:$0xff] %v1706
        %1728 = vst [vmem:[#allocation2 + $0x40] sm:$0xff] %v1707
        %1729 = vst [vmem:[#allocation2 + $0x48] sm:$0xff] %v1708
        %1730 = vst [vmem:[#allocation2 + $0x50] sm:$0xff] %v1709
        %1731 = vst [vmem:[#allocation2 + $0x58] sm:$0xff] %v1710
        %1732 = vst [vmem:[#allocation2 + $0x60] sm:$0xff] %v1711
        %1733 = vst [vmem:[#allocation2 + $0x68] sm:$0xff] %v1712
        %1734 = vst [vmem:[#allocation2 + $0x70] sm:$0x3] %v1713
        %1735 = vst [vmem:[#allocation2 + $0x78] sm:$0x3] %v1714
        %1736 = vst [vmem:[#allocation2 + $0x80] sm:$0x3] %v1715
        %1737 = vst [vmem:[#allocation2 + $0x88] sm:$0x3] %v1716
        %1738 = vst [vmem:[#allocation2 + $0x90] sm:$0x3] %v1717
        %1739 = vst [vmem:[#allocation2 + $0x98] sm:$0x3] %v1718
        %1740 = vst [vmem:[#allocation2 + $0xa0] sm:$0x3] %v1719
        %v1741 = vld [vmem:[#allocation2] sm:$0xff]
        %v1742 = vld [vmem:[#allocation2 + $0x8] sm:$0xff]
        %v1743 = vld [vmem:[#allocation2 + $0x10] sm:$0xff]
        %v1744 = vld [vmem:[#allocation2 + $0x18] sm:$0xff]
        %v1745 = vld [vmem:[#allocation2 + $0x20] sm:$0xff]
        %v1746 = vld [vmem:[#allocation2 + $0x28] sm:$0xff]
        %v1747 = vld [vmem:[#allocation2 + $0x30] sm:$0xff]
        %v1748 = vld [vmem:[#allocation2 + $0x38] sm:$0xff]
        %v1749 = vld [vmem:[#allocation2 + $0x40] sm:$0xff]
        %v1750 = vld [vmem:[#allocation2 + $0x48] sm:$0xff]
        %v1751 = vld [vmem:[#allocation2 + $0x50] sm:$0xff]
        %v1752 = vld [vmem:[#allocation2 + $0x58] sm:$0xff]
        %v1753 = vld [vmem:[#allocation2 + $0x60] sm:$0xff]
        %v1754 = vld [vmem:[#allocation2 + $0x68] sm:$0xff]
        %v1755 = vld [vmem:[#allocation2 + $0x70] sm:$0x3]
        %v1756 = vld [vmem:[#allocation2 + $0x78] sm:$0x3]
        %v1757 = vld [vmem:[#allocation2 + $0x80] sm:$0x3]
        %v1758 = vld [vmem:[#allocation2 + $0x88] sm:$0x3]
        %v1759 = vld [vmem:[#allocation2 + $0x90] sm:$0x3]
        %v1760 = vld [vmem:[#allocation2 + $0x98] sm:$0x3]
        %v1761 = vld [vmem:[#allocation2 + $0xa0] sm:$0x3]
        %v1762 = vpack.c.bf16 %v1748, %v1741
        %v1763 = vpack.c.bf16 %v1749, %v1742
        %v1764 = vpack.c.bf16 %v1750, %v1743
        %v1765 = vpack.c.bf16 %v1751, %v1744
        %v1766 = vpack.c.bf16 %v1752, %v1745
        %v1767 = vpack.c.bf16 %v1753, %v1746
        %v1768 = vpack.c.bf16 %v1754, %v1747
        %v1769 = vpack.c.bf16 %v1755, %v1755
        %v1770 = vpack.c.bf16 %v1756, %v1756
        %v1771 = vpack.c.bf16 %v1757, %v1757
        %v1772 = vpack.c.bf16 %v1758, %v1758
        %v1773 = vpack.c.bf16 %v1759, %v1759
        %v1774 = vpack.c.bf16 %v1760, %v1760
        %v1775 = vpack.c.bf16 %v1761, %v1761
        %v1790 = vunpack.c.l.b16 %v1762
        %v1791 = vunpack.c.l.b16 %v1763
        %v1792 = vunpack.c.l.b16 %v1764
        %v1793 = vunpack.c.l.b16 %v1765
        %v1794 = vunpack.c.l.b16 %v1766
        %v1795 = vunpack.c.l.b16 %v1767
        %v1796 = vunpack.c.l.b16 %v1768
        %v1797 = vunpack.c.h.b16 %v1762
        %v1798 = vunpack.c.h.b16 %v1763
        %v1799 = vunpack.c.h.b16 %v1764
        %v1800 = vunpack.c.h.b16 %v1765
        %v1801 = vunpack.c.h.b16 %v1766
        %v1802 = vunpack.c.h.b16 %v1767
        %v1803 = vunpack.c.h.b16 %v1768
        %v1804 = vunpack.c.l.b16 %v1769
        %v1805 = vunpack.c.l.b16 %v1770
        %v1806 = vunpack.c.l.b16 %v1771
        %v1807 = vunpack.c.l.b16 %v1772
        %v1808 = vunpack.c.l.b16 %v1773
        %v1809 = vunpack.c.l.b16 %v1774
        %v1810 = vunpack.c.l.b16 %v1775
        %v1811 = vpack.c.b16 %v1791, %v1790
        %v1812 = vpack.c.b16 %v1793, %v1792
        %v1813 = vpack.c.b16 %v1795, %v1794
        %v1814 = vpack.c.b16 %v1796, %v1796
        %v1815 = vpack.c.b16 %v1798, %v1797
        %v1816 = vpack.c.b16 %v1800, %v1799
        %v1817 = vpack.c.b16 %v1802, %v1801
        %v1818 = vpack.c.b16 %v1803, %v1803
        %v1819 = vpack.c.b16 %v1805, %v1804
        %v1820 = vpack.c.b16 %v1807, %v1806
        %v1821 = vpack.c.b16 %v1809, %v1808
        %v1822 = vpack.c.b16 %v1810, %v1810
        %1835 = vst [vmem:[%s181] sm:$0xff] %v1811
        %1836 = vst [vmem:[%s181 + $0x8] sm:$0xff] %v1812
        %1837 = vst [vmem:[%s181 + $0x10] sm:$0xff] %v1813
        %1838 = vst [vmem:[%s181 + $0x18] sm:$0xf] %v1814
        %1839 = vst [vmem:[%s181 + $0x1c] sm:$0xff] %v1815
        %1840 = vst [vmem:[%s181 + $0x24] sm:$0xff] %v1816
        %1841 = vst [vmem:[%s181 + $0x2c] sm:$0xff] %v1817
        %1842 = vst [vmem:[%s181 + $0x34] sm:$0xf] %v1818
        %1843 = vst [vmem:[%s181 + $0x38] sm:$0x11] %v1819
        %1844 = vst [vmem:[%s181 + $0x40] sm:$0x11] %v1820
        %1845 = vst [vmem:[%s181 + $0x48] sm:$0x11] %v1821
        %1846 = vst [vmem:[%s181 + $0x50] sm:$0x1] %v1822
        %v1847 = vadd.f32 %v1741, %v1748
        %v1848 = vsel %vm267, %v1755, 0.0
        %v1849 = vadd.f32 %v1847, %v1848
        %v1850 = vrot.slane %v1849, 4
        %v1851 = vadd.f32 %v1849, %v1850
        %v1852 = vrot.slane %v1851, 2
        %v1853 = vadd.f32 %v1851, %v1852
        %v1854 = vrot.slane %v1853, 1
        %v1855 = vadd.f32 %v1853, %v1854
        %v1856 = vadd.f32 %v1742, %v1749
        %v1857 = vsel %vm267, %v1756, 0.0
        %v1858 = vadd.f32 %v1856, %v1857
        %v1859 = vrot.slane %v1858, 4
        %v1860 = vadd.f32 %v1858, %v1859
        %v1861 = vrot.slane %v1860, 2
        %v1862 = vadd.f32 %v1860, %v1861
        %v1863 = vrot.slane %v1862, 1
        %v1864 = vadd.f32 %v1862, %v1863
        %v1865 = vadd.f32 %v1743, %v1750
        %v1866 = vsel %vm267, %v1757, 0.0
        %v1867 = vadd.f32 %v1865, %v1866
        %v1868 = vrot.slane %v1867, 4
        %v1869 = vadd.f32 %v1867, %v1868
        %v1870 = vrot.slane %v1869, 2
        %v1871 = vadd.f32 %v1869, %v1870
        %v1872 = vrot.slane %v1871, 1
        %v1873 = vadd.f32 %v1871, %v1872
        %v1874 = vadd.f32 %v1744, %v1751
        %v1875 = vsel %vm267, %v1758, 0.0
        %v1876 = vadd.f32 %v1874, %v1875
        %v1877 = vrot.slane %v1876, 4
        %v1878 = vadd.f32 %v1876, %v1877
        %v1879 = vrot.slane %v1878, 2
        %v1880 = vadd.f32 %v1878, %v1879
        %v1881 = vrot.slane %v1880, 1
        %v1882 = vadd.f32 %v1880, %v1881
        %v1883 = vadd.f32 %v1745, %v1752
        %v1884 = vsel %vm267, %v1759, 0.0
        %v1885 = vadd.f32 %v1883, %v1884
        %v1886 = vrot.slane %v1885, 4
        %v1887 = vadd.f32 %v1885, %v1886
        %v1888 = vrot.slane %v1887, 2
        %v1889 = vadd.f32 %v1887, %v1888
        %v1890 = vrot.slane %v1889, 1
        %v1891 = vadd.f32 %v1889, %v1890
        %v1892 = vadd.f32 %v1746, %v1753
        %v1893 = vsel %vm267, %v1760, 0.0
        %v1894 = vadd.f32 %v1892, %v1893
        %v1895 = vrot.slane %v1894, 4
        %v1896 = vadd.f32 %v1894, %v1895
        %v1897 = vrot.slane %v1896, 2
        %v1898 = vadd.f32 %v1896, %v1897
        %v1899 = vrot.slane %v1898, 1
        %v1900 = vadd.f32 %v1898, %v1899
        %v1901 = vadd.f32 %v1747, %v1754
        %v1902 = vsel %vm267, %v1761, 0.0
        %v1903 = vadd.f32 %v1901, %v1902
        %v1904 = vrot.slane %v1903, 4
        %v1905 = vadd.f32 %v1903, %v1904
        %v1906 = vrot.slane %v1905, 2
        %v1907 = vadd.f32 %v1905, %v1906
        %v1908 = vrot.slane %v1907, 1
        %v1909 = vadd.f32 %v1907, %v1908
        %v1917 = vcombine.low %v1855, %v1864
        %v1918 = vcombine.low %v1873, %v1882
        %v1919 = vcombine.low %v1891, %v1900
        %v1921 = vunpack.c.l.s4 1966171168
        %v1922 = vunpack.c.0.s8 %v1921
        %v1923 = vlaneseq
        %v1924 = vshrl.u32 %v1923, 7
        %v1925 = vsub.s32 %v1922, %v1924
        %v1926 = vrot.slane %v1917, %v1925
        %v1928 = vunpack.c.l.s4 1966171168
        %v1929 = vunpack.c.0.s8 %v1928
        %v1930 = vlaneseq
        %v1931 = vshrl.u32 %v1930, 7
        %v1932 = vsub.s32 %v1929, %v1931
        %v1933 = vrot.slane %v1918, %v1932
        %v1935 = vunpack.c.l.s4 1966171168
        %v1936 = vunpack.c.0.s8 %v1935
        %v1937 = vlaneseq
        %v1938 = vshrl.u32 %v1937, 7
        %v1939 = vsub.s32 %v1936, %v1938
        %v1940 = vrot.slane %v1919, %v1939
        %v1942 = vunpack.c.l.s4 1966171168
        %v1943 = vunpack.c.0.s8 %v1942
        %v1944 = vlaneseq
        %v1945 = vshrl.u32 %v1944, 7
        %v1946 = vsub.s32 %v1943, %v1945
        %v1947 = vrot.slane %v1909, %v1946
        %v1948 = vcombine.low %v1926, %v1933
        %v1949 = vcombine.low %v1940, %v1947
        %v1951 = vunpack.c.l.s4 1966171168
        %v1952 = vunpack.c.0.s8 %v1951
        %v1953 = vlaneseq
        %v1954 = vshrl.u32 %v1953, 7
        %v1955 = vsub.s32 %v1952, %v1954
        %v1956 = vrot.slane %v1948, %v1955
        %v1958 = vunpack.c.l.s4 1966171168
        %v1959 = vunpack.c.0.s8 %v1958
        %v1960 = vlaneseq
        %v1961 = vshrl.u32 %v1960, 7
        %v1962 = vsub.s32 %v1959, %v1961
        %v1963 = vrot.slane %v1949, %v1962
        %v1964 = vcombine.low %v1956, %v1963
        %v1966 = vlaneseq
        %vm1967 = vcmp.ge.s32.totalorder %v1966, 0
        %vm1968 = vcmp.lt.s32.totalorder %v1966, 896
        %vm1969 = vmand %vm1967, %vm1968
        %1970 = vst.msk [vmem:[%s171] ss:$2 sm:$0x7f] %vm1969, %v1964
        %v1971 = vmul.f32 %v1741, %v1741
        %v1972 = vmul.f32 %v1742, %v1742
        %v1973 = vmul.f32 %v1743, %v1743
        %v1974 = vmul.f32 %v1744, %v1744
        %v1975 = vmul.f32 %v1745, %v1745
        %v1976 = vmul.f32 %v1746, %v1746
        %v1977 = vmul.f32 %v1747, %v1747
        %v1978 = vmul.f32 %v1748, %v1748
        %v1979 = vmul.f32 %v1749, %v1749
        %v1980 = vmul.f32 %v1750, %v1750
        %v1981 = vmul.f32 %v1751, %v1751
        %v1982 = vmul.f32 %v1752, %v1752
        %v1983 = vmul.f32 %v1753, %v1753
        %v1984 = vmul.f32 %v1754, %v1754
        %v1985 = vmul.f32 %v1755, %v1755
        %v1986 = vmul.f32 %v1756, %v1756
        %v1987 = vmul.f32 %v1757, %v1757
        %v1988 = vmul.f32 %v1758, %v1758
        %v1989 = vmul.f32 %v1759, %v1759
        %v1990 = vmul.f32 %v1760, %v1760
        %v1991 = vmul.f32 %v1761, %v1761
        %v1992 = vadd.f32 %v1971, %v1978
        %v1993 = vsel %vm267, %v1985, 0.0
        %v1994 = vadd.f32 %v1992, %v1993
        %v1995 = vrot.slane %v1994, 4
        %v1996 = vadd.f32 %v1994, %v1995
        %v1997 = vrot.slane %v1996, 2
        %v1998 = vadd.f32 %v1996, %v1997
        %v1999 = vrot.slane %v1998, 1
        %v2000 = vadd.f32 %v1998, %v1999
        %v2001 = vadd.f32 %v1972, %v1979
        %v2002 = vsel %vm267, %v1986, 0.0
        %v2003 = vadd.f32 %v2001, %v2002
        %v2004 = vrot.slane %v2003, 4
        %v2005 = vadd.f32 %v2003, %v2004
        %v2006 = vrot.slane %v2005, 2
        %v2007 = vadd.f32 %v2005, %v2006
        %v2008 = vrot.slane %v2007, 1
        %v2009 = vadd.f32 %v2007, %v2008
        %v2010 = vadd.f32 %v1973, %v1980
        %v2011 = vsel %vm267, %v1987, 0.0
        %v2012 = vadd.f32 %v2010, %v2011
        %v2013 = vrot.slane %v2012, 4
        %v2014 = vadd.f32 %v2012, %v2013
        %v2015 = vrot.slane %v2014, 2
        %v2016 = vadd.f32 %v2014, %v2015
        %v2017 = vrot.slane %v2016, 1
        %v2018 = vadd.f32 %v2016, %v2017
        %v2019 = vadd.f32 %v1974, %v1981
        %v2020 = vsel %vm267, %v1988, 0.0
        %v2021 = vadd.f32 %v2019, %v2020
        %v2022 = vrot.slane %v2021, 4
        %v2023 = vadd.f32 %v2021, %v2022
        %v2024 = vrot.slane %v2023, 2
        %v2025 = vadd.f32 %v2023, %v2024
        %v2026 = vrot.slane %v2025, 1
        %v2027 = vadd.f32 %v2025, %v2026
        %v2028 = vadd.f32 %v1975, %v1982
        %v2029 = vsel %vm267, %v1989, 0.0
        %v2030 = vadd.f32 %v2028, %v2029
        %v2031 = vrot.slane %v2030, 4
        %v2032 = vadd.f32 %v2030, %v2031
        %v2033 = vrot.slane %v2032, 2
        %v2034 = vadd.f32 %v2032, %v2033
        %v2035 = vrot.slane %v2034, 1
        %v2036 = vadd.f32 %v2034, %v2035
        %v2037 = vadd.f32 %v1976, %v1983
        %v2038 = vsel %vm267, %v1990, 0.0
        %v2039 = vadd.f32 %v2037, %v2038
        %v2040 = vrot.slane %v2039, 4
        %v2041 = vadd.f32 %v2039, %v2040
        %v2042 = vrot.slane %v2041, 2
        %v2043 = vadd.f32 %v2041, %v2042
        %v2044 = vrot.slane %v2043, 1
        %v2045 = vadd.f32 %v2043, %v2044
        %v2046 = vadd.f32 %v1977, %v1984
        %v2047 = vsel %vm267, %v1991, 0.0
        %v2048 = vadd.f32 %v2046, %v2047
        %v2049 = vrot.slane %v2048, 4
        %v2050 = vadd.f32 %v2048, %v2049
        %v2051 = vrot.slane %v2050, 2
        %v2052 = vadd.f32 %v2050, %v2051
        %v2053 = vrot.slane %v2052, 1
        %v2054 = vadd.f32 %v2052, %v2053
        %v2062 = vcombine.low %v2000, %v2009
        %v2063 = vcombine.low %v2018, %v2027
        %v2064 = vcombine.low %v2036, %v2045
        %v2066 = vunpack.c.l.s4 1966171168
        %v2067 = vunpack.c.0.s8 %v2066
        %v2068 = vlaneseq
        %v2069 = vshrl.u32 %v2068, 7
        %v2070 = vsub.s32 %v2067, %v2069
        %v2071 = vrot.slane %v2062, %v2070
        %v2073 = vunpack.c.l.s4 1966171168
        %v2074 = vunpack.c.0.s8 %v2073
        %v2075 = vlaneseq
        %v2076 = vshrl.u32 %v2075, 7
        %v2077 = vsub.s32 %v2074, %v2076
        %v2078 = vrot.slane %v2063, %v2077
        %v2080 = vunpack.c.l.s4 1966171168
        %v2081 = vunpack.c.0.s8 %v2080
        %v2082 = vlaneseq
        %v2083 = vshrl.u32 %v2082, 7
        %v2084 = vsub.s32 %v2081, %v2083
        %v2085 = vrot.slane %v2064, %v2084
        %v2087 = vunpack.c.l.s4 1966171168
        %v2088 = vunpack.c.0.s8 %v2087
        %v2089 = vlaneseq
        %v2090 = vshrl.u32 %v2089, 7
        %v2091 = vsub.s32 %v2088, %v2090
        %v2092 = vrot.slane %v2054, %v2091
        %v2093 = vcombine.low %v2071, %v2078
        %v2094 = vcombine.low %v2085, %v2092
        %v2096 = vunpack.c.l.s4 1966171168
        %v2097 = vunpack.c.0.s8 %v2096
        %v2098 = vlaneseq
        %v2099 = vshrl.u32 %v2098, 7
        %v2100 = vsub.s32 %v2097, %v2099
        %v2101 = vrot.slane %v2093, %v2100
        %v2103 = vunpack.c.l.s4 1966171168
        %v2104 = vunpack.c.0.s8 %v2103
        %v2105 = vlaneseq
        %v2106 = vshrl.u32 %v2105, 7
        %v2107 = vsub.s32 %v2104, %v2106
        %v2108 = vrot.slane %v2094, %v2107
        %v2109 = vcombine.low %v2101, %v2108
        %s2111 = scalar_lea.vmem %s171, 1 [#allocation3]
        %2112 = vst.msk [vmem:[%s2111] ss:$2 sm:$0x7f] %vm1969, %v2109
        %p2113 = scmp.lt.s32.totalorder %s18, 3
        %s2114 = scalar_select %p2113, %s18, 3
        %s2115 = smul.addr %s2114, 21
        %s2116 = smul.addr %s2115, 4
        %s2117 = scalar_lea.vmem %s2, %s2116
        %s2118 = sand.u32 %s99, 1
        %s2119 = scalar_lea.sflag [#allocation4], %s2118
        %s2120 = sand.u32 %s99, 1
        %s2121 = smul.addr %s2120, 14
        %s2122 = scalar_lea.vmem [#allocation3], %s2121
        // Predicated region
        $region29: #{tpu_custom_call.1} parent=27 // pred_check
          %p2123 = pneg %p83
        $region30: #{tpu_custom_call.1} parent=27 // pred_check_branch
          %2125 = sbr.rel (%p2123) target = $region32
        $region31: #{tpu_custom_call.1} parent=27 // pred_region
          _
        $region32: #{tpu_custom_call.1} parent=27 // pred_fallthru
          _
        // Predicated region
        $region33: #{tpu_custom_call.1} parent=27 // pred_check
          %p2126 = pneg %p109
        $region34: #{tpu_custom_call.1} parent=27 // pred_check_branch
          %2128 = sbr.rel (%p2126) target = $region36
        $region35: #{tpu_custom_call.1} parent=27 // pred_region
          %s2130 = ssub.s32 224, 224
          %2131 = vsyncadd %s2119, %s2130
          %s2132 = smul.addr %s18, 7
          %s2133 = smul.addr %s2132, 32
          %s2134 = scalar_lea.hbm %s3, %s2133
          %s2136 = sshll.u32 %s2122, 4
          %s2137 = int_to_ptr.vmem [resolvable:$true] %s2136
          %2139 = dma.vmem_to_hbm [thread:$0]  %s2137, 224, %s2134, %s2119
        $region36: #{tpu_custom_call.1} parent=27 // pred_fallthru
          _
      $region28: #{tpu_custom_call.1} parent=5 // pred_fallthru
        _
      %p2140 = scmp.le.s32.totalorder 2, %s13
      // Predicated region
      $region37: #{tpu_custom_call.1} parent=5 // pred_check
        %p2141 = pneg %p2140
      $region38: #{tpu_custom_call.1} parent=5 // pred_check_branch
        %2143 = sbr.rel (%p2141) target = $region40
      $region39: #{tpu_custom_call.1} parent=5 // pred_region
        %s2144 = ssub.s32 %s13, 2
        // Predicated region
        $region41: #{tpu_custom_call.1} parent=39 // pred_check
          %p2145 = pneg %p89
        $region42: #{tpu_custom_call.1} parent=39 // pred_check_branch
          %2147 = sbr.rel (%p2145) target = $region44
        $region43: #{tpu_custom_call.1} parent=39 // pred_region
          %p2148 = scmp.lt.s32.totalorder %s19, 3
          %s2149 = scalar_select %p2148, %s19, 3
          %s2150 = smul.addr %s2149, 21
          %s2151 = smul.addr %s2150, 4
          %s2152 = scalar_lea.vmem %s2, %s2151
        $region44: #{tpu_custom_call.1} parent=39 // pred_fallthru
          _
        // Predicated region
        $region45: #{tpu_custom_call.1} parent=39 // pred_check
          %p2153 = pneg %p115
        $region46: #{tpu_custom_call.1} parent=39 // pred_check_branch
          %2155 = sbr.rel (%p2153) target = $region48
        $region47: #{tpu_custom_call.1} parent=39 // pred_region
          %s2156 = sand.u32 %s100, 1
          %s2157 = scalar_lea.sflag [#allocation4], %s2156
          %s2158 = sand.u32 %s100, 1
          %s2159 = smul.addr %s2158, 14
          %s2160 = scalar_lea.vmem [#allocation3], %s2159
          %2161 = dma.done %s2157, 224
        $region48: #{tpu_custom_call.1} parent=39 // pred_fallthru
          _
      $region40: #{tpu_custom_call.1} parent=5 // pred_fallthru
        _
    $region6: #{tpu_custom_call.1} parent=1 // loop_footer
      %s17 = sadd.s32 1, %s13
    $region7: #{tpu_custom_call.1} parent=1 // loop_footer_branch
      %12 = sbr.rel target = $region3
    $region8: #{tpu_custom_call.1} parent=1 // loop_exit
      _
    %2162 = vsyncpa [#allocation4], 1
    %s2163 = scalar_lea.sflag [#allocation4], 1
    %2164 = vsyncpa %s2163, 1

</llo_original>
